<compile_context>
chip_gen: v7x
topology: tpu7x:2x2x1
jax: 0.10.0
libtpu: 0.0.40
codegen_flags: <defaults>
</compile_context>

<pallas_src>
import functools

import jax
import jax.numpy as jnp
from jax.experimental import pallas as pl
from jax.experimental.pallas import tpu as pltpu


TRANS_B = (((1,), (1,)), ((), ()))  # contract last dims of both operands


def _attention_block_kernel(
    x_ref,      # (1, C, S)  f32 input, channels-first (full S, reused across q-tiles)
    gavg_ref,   # (C, C)     f32 block-diagonal group-average matrix (1/(Cg*S))
    cp_ref,     # (C, 3)     f32 packed per-channel params [gamma | beta | b_out]
    wq_t_ref,   # (C, C)     bf16 Wq^T with the 1/sqrt(C) scale folded in
    bq_ref,     # (1, C)     f32  bq * 1/sqrt(C)
    wkv1_ref,   # (2C+1, C)  bf16 [Wk ; Wv ; 0]
    bkv1_ref,   # (2C+1, 1)  f32  [bk ; bv ; 1]  (last row -> softmax-denominator trick)
    wout_ref,   # (C, C)     bf16 Wout
    o_ref,      # (1, C, TQ) f32
    *, eps, tq,
):
    c = x_ref.shape[1]
    j = pl.program_id(1)
    q0 = j * tq
    if tq % 128 == 0:
        q0 = pl.multiple_of(q0, 128)

    x_cs = x_ref[0]                                              # (C, S) f32

    # ---------------- GroupNorm (channels-first, lane-dense) ----------------
    sum_c = jnp.sum(x_cs, axis=1, keepdims=True)                 # (C, 1)
    sq_c = jnp.sum(x_cs * x_cs, axis=1, keepdims=True)           # (C, 1)
    mean = jnp.dot(gavg_ref[...], sum_c, preferred_element_type=jnp.float32)
    msq = jnp.dot(gavg_ref[...], sq_c, preferred_element_type=jnp.float32)
    # Single-pass var in f32 (cancellation only matters when |mean| >> std,
    # which GroupNorm-scale activations do not hit).
    var = msq - mean * mean
    inv = jax.lax.rsqrt(var + eps)                               # (C, 1), EUP
    gamma = cp_ref[:, 0:1]
    beta = cp_ref[:, 1:2]
    bout = cp_ref[:, 2:3]
    a_col = inv * gamma                                          # (C, 1)
    b_col = beta - mean * a_col                                  # (C, 1)
    xn_bf = (x_cs * a_col + b_col).astype(jnp.bfloat16)          # (C, S)

    # ------------ fused K / V / ones projection (channels-first) ------------
    kv1 = (jnp.dot(wkv1_ref[...], xn_bf, preferred_element_type=jnp.float32)
           + bkv1_ref[...])                                      # (2C+1, S) f32
    k_bf = kv1[:c].astype(jnp.bfloat16)                          # (C, S)
    vaug_bf = kv1[c:].astype(jnp.bfloat16)                       # (C+1, S): [V ; 1]

    # ------------- Q for this query tile (scale folded into Wq/bq) ----------
    x_tile = x_ref[0, :, pl.ds(q0, tq)]                          # (C, TQ) f32
    xq_sc = (x_tile * a_col + b_col).T                           # (TQ, C) in-kernel transpose
    q_bf = (jnp.dot(xq_sc.astype(jnp.bfloat16), wq_t_ref[...],
                    preferred_element_type=jnp.float32)
            + bq_ref[...]).astype(jnp.bfloat16)                  # (TQ, C)

    # ------ attention: scores, softmax with deferred normalization, PV ------
    scores = jnp.dot(q_bf, k_bf, preferred_element_type=jnp.float32)    # (TQ, S)
    m = jnp.max(scores, axis=-1, keepdims=True)                         # (TQ, 1)
    p_bf = jnp.exp(scores - m).astype(jnp.bfloat16)                     # (TQ, S)
    out_aug = jax.lax.dot_general(vaug_bf, p_bf, TRANS_B,
                                  preferred_element_type=jnp.float32)   # (C+1, TQ)
    inv_l = pl.reciprocal(out_aug[c:c + 1], approx=False)               # (1, TQ) exact
    out_bf = (out_aug[:c] * inv_l).astype(jnp.bfloat16)                 # (C, TQ)

    # ------------------ to_out (1x1x1 conv) + residual ----------------------
    y = (jnp.dot(wout_ref[...], out_bf, preferred_element_type=jnp.float32)
         + bout + x_tile)                                                # (C, TQ)
    o_ref[0] = y.astype(o_ref.dtype)


def attention_block_forward(x, params, num_groups, eps=1e-5, q_tile=256):
    """x: (N, C, H, W, D) torch layout -> (N, C, H, W, D).  norm='gn' only."""
    n, c, h, w, d = x.shape
    s = h * w * d
    assert c % num_groups == 0
    cg = c // num_groups

    # Query-tile size: lane-dense (multiple of 128) and dividing S when possible.
    if s % q_tile == 0:
        tq = q_tile
    elif s % 128 == 0:
        tq = 128
    else:
        tq = s
    nq = s // tq

    x_cs = x.reshape(n, c, s).astype(jnp.float32)

    scale = c ** (-0.5)
    wqkv = params["qkv_w"].reshape(3 * c, c).astype(jnp.float32)
    bqkv = params["qkv_b"].astype(jnp.float32)
    wq, wk, wv = wqkv[:c], wqkv[c:2 * c], wqkv[2 * c:]
    bq, bk, bv = bqkv[:c], bqkv[c:2 * c], bqkv[2 * c:]

    wq_t = (wq.T * scale).astype(jnp.bfloat16)                  # (C, C), scale folded
    bq_row = (bq * scale).reshape(1, c)                         # (1, C) f32
    wkv1 = jnp.concatenate(
        [wk, wv, jnp.zeros((1, c), jnp.float32)], axis=0).astype(jnp.bfloat16)
    bkv1 = jnp.concatenate(
        [bk, bv, jnp.ones((1,), jnp.float32)]).reshape(2 * c + 1, 1)
    wout = params["out_w"].reshape(c, c).astype(jnp.bfloat16)
    cparams = jnp.stack(
        [params["gn_gamma"], params["gn_beta"], params["out_b"]],
        axis=1).astype(jnp.float32)                             # (C, 3)

    # Block-diagonal group-average matrix: raw per-channel sums -> group means.
    gavg = jnp.kron(jnp.eye(num_groups, dtype=jnp.float32),
                    jnp.full((cg, cg), 1.0 / (cg * s), dtype=jnp.float32))

    # Rough per-step VMEM need; raise the scoped limit when S is large,
    # but stay conservative w.r.t. v7x's 64 MiB total VMEM.
    est = (2 * c * s * 4 + 2 * c * tq * 4 + 3 * tq * s * 4
           + (2 * c + 1) * s * 8 + 4 * c * s)
    vmem_limit = int(min(max(2 * est, 32 * 2**20), 48 * 2**20))

    kern = functools.partial(_attention_block_kernel, eps=eps, tq=tq)
    rep = lambda i, j: (0, 0)
    out = pl.pallas_call(
        kern,
        out_shape=jax.ShapeDtypeStruct((n, c, s), jnp.float32),
        grid=(n, nq),
        in_specs=[
            pl.BlockSpec((1, c, s), lambda i, j: (i, 0, 0)),    # x (fetched once per i)
            pl.BlockSpec((c, c), rep),                          # gavg
            pl.BlockSpec((c, 3), rep),                          # [gamma|beta|b_out]
            pl.BlockSpec((c, c), rep),                          # Wq^T (scaled)
            pl.BlockSpec((1, c), rep),                          # bq (scaled)
            pl.BlockSpec((2 * c + 1, c), rep),                  # [Wk;Wv;0]
            pl.BlockSpec((2 * c + 1, 1), rep),                  # [bk;bv;1]
            pl.BlockSpec((c, c), rep),                          # Wout
        ],
        out_specs=pl.BlockSpec((1, c, tq), lambda i, j: (i, 0, j)),
        compiler_params=pltpu.CompilerParams(
            dimension_semantics=("parallel", "parallel"),
            vmem_limit_bytes=vmem_limit),
    )(x_cs, gavg, cparams, wq_t, bq_row, wkv1, bkv1, wout)
    return out.reshape(n, c, h, w, d)


# -----------------------------------------------------------------------------
# Plain-JAX reference (matches PyTorch AttentionBlock semantics) for verification
# -----------------------------------------------------------------------------
def ref_forward(x, params, num_groups, eps=1e-5):
    n, c, h, w, d = x.shape
    s = h * w * d
    hp = jax.lax.Precision.HIGHEST

    xr = x.reshape(n, num_groups, -1)
    mean = xr.mean(axis=-1, keepdims=True)
    var = xr.var(axis=-1, keepdims=True)
    xn = ((xr - mean) / jnp.sqrt(var + eps)).reshape(n, c, h, w, d)
    xn = (xn * params["gn_gamma"][None, :, None, None, None]
          + params["gn_beta"][None, :, None, None, None])

    wqkv = params["qkv_w"].reshape(3 * c, c)
    qkv = jnp.einsum("nchwd,oc->nohwd", xn, wqkv, precision=hp)
    qkv = qkv + params["qkv_b"][None, :, None, None, None]
    q, k, v = qkv[:, :c], qkv[:, c:2 * c], qkv[:, 2 * c:]

    q = q.reshape(n, c, s).transpose(0, 2, 1)    # (n, s, c)
    k = k.reshape(n, c, s)                       # (n, c, s)
    v = v.reshape(n, c, s).transpose(0, 2, 1)    # (n, s, c)
    dots = jnp.einsum("nsc,nct->nst", q, k, precision=hp) * (c ** (-0.5))
    attn = jax.nn.softmax(dots, axis=-1)
    out = jnp.einsum("nst,ntc->nsc", attn, v, precision=hp)   # (n, s, c)
    out = out.transpose(0, 2, 1).reshape(n, c, h, w, d)

    wout = params["out_w"].reshape(c, c)
    out = jnp.einsum("nchwd,oc->nohwd", out, wout, precision=hp)
    out = out + params["out_b"][None, :, None, None, None]
    return out + x


if __name__ == "__main__":
    key = jax.random.PRNGKey(0)
    N, C = 2, 8
    H = W = D = 8          # S = 512  -> TQ = 256, grid (2, 2), both axes parallel
    G = 4

    ks = jax.random.split(key, 7)
    x = jax.random.normal(ks[0], (N, C, H, W, D), jnp.float32)
    params = {
        "gn_gamma": 1.0 + 0.1 * jax.random.normal(ks[1], (C,), jnp.float32),
        "gn_beta": 0.1 * jax.random.normal(ks[2], (C,), jnp.float32),
        "qkv_w": 0.3 * jax.random.normal(ks[3], (3 * C, C, 1, 1, 1), jnp.float32),
        "qkv_b": 0.1 * jax.random.normal(ks[4], (3 * C,), jnp.float32),
        "out_w": 0.3 * jax.random.normal(ks[5], (C, C, 1, 1, 1), jnp.float32),
        "out_b": 0.1 * jax.random.normal(ks[6], (C,), jnp.float32),
    }

    out = jax.block_until_ready(attention_block_forward(x, params, G))
    ref = jax.block_until_ready(ref_forward(x, params, G))

    assert out.shape == (N, C, H, W, D)
    max_err = float(jnp.max(jnp.abs(out - ref)))
    assert jnp.allclose(out, ref, rtol=5e-2, atol=5e-2), max_err

    print("KERNEL_OK")
</pallas_src>

<mosaic_0001>
module attributes {stable_mosaic.version = 11 : i64} {
  func.func @_attention_block_kernel(%arg0: i32, %arg1: i32, %arg2: memref<1x8x512xf32, #tpu.memory_space<vmem>>, %arg3: memref<8x8xf32, #tpu.memory_space<vmem>>, %arg4: memref<8x3xf32, #tpu.memory_space<vmem>>, %arg5: memref<8x8xbf16, #tpu.memory_space<vmem>>, %arg6: memref<1x8xf32, #tpu.memory_space<vmem>>, %arg7: memref<17x8xbf16, #tpu.memory_space<vmem>>, %arg8: memref<17x1xf32, #tpu.memory_space<vmem>>, %arg9: memref<8x8xbf16, #tpu.memory_space<vmem>>, %arg10: memref<1x8x256xf32, #tpu.memory_space<vmem>>) attributes {dimension_semantics = [#tpu.dimension_semantics<parallel>, #tpu.dimension_semantics<parallel>], iteration_bounds = array<i64: 2, 2>, scalar_prefetch = 0 : i64, scratch_operands = 0 : i64, tpu.core_type = #tpu.core_type<tc>, window_params = [{transform_indices = @transform_0, window_bounds = array<i64: 1, 8, 512>}, {pipeline_mode = #tpu.pipeline_mode<synchronous>, transform_indices = @transform_1, window_bounds = array<i64: 8, 8>}, {pipeline_mode = #tpu.pipeline_mode<synchronous>, transform_indices = @transform_2, window_bounds = array<i64: 8, 3>}, {pipeline_mode = #tpu.pipeline_mode<synchronous>, transform_indices = @transform_3, window_bounds = array<i64: 8, 8>}, {pipeline_mode = #tpu.pipeline_mode<synchronous>, transform_indices = @transform_4, window_bounds = array<i64: 1, 8>}, {pipeline_mode = #tpu.pipeline_mode<synchronous>, transform_indices = @transform_5, window_bounds = array<i64: 17, 8>}, {pipeline_mode = #tpu.pipeline_mode<synchronous>, transform_indices = @transform_6, window_bounds = array<i64: 17, 1>}, {pipeline_mode = #tpu.pipeline_mode<synchronous>, transform_indices = @transform_7, window_bounds = array<i64: 8, 8>}, {transform_indices = @transform_8, window_bounds = array<i64: 1, 8, 256>}]} {
    %c256_i32 = arith.constant 256 : i32
    %0 = arith.muli %arg1, %c256_i32 : i32
    %1 = tpu.assume_multiple %0, 128 : i32
    %c0 = arith.constant 0 : index
    %c0_0 = arith.constant 0 : index
    %c0_1 = arith.constant 0 : index
    %2 = vector.load %arg2[%c0, %c0_0, %c0_1] : memref<1x8x512xf32, #tpu.memory_space<vmem>>, vector<1x8x512xf32>
    %3 = vector.shape_cast %2 : vector<1x8x512xf32> to vector<8x512xf32>
    %cst = arith.constant dense<0.000000e+00> : vector<8xf32>
    %4 = vector.multi_reduction <add>, %3, %cst [1] : vector<8x512xf32> to vector<8xf32>
    %5 = vector.shape_cast %4 : vector<8xf32> to vector<8x1xf32>
    %6 = arith.mulf %3, %3 : vector<8x512xf32>
    %cst_2 = arith.constant dense<0.000000e+00> : vector<8xf32>
    %7 = vector.multi_reduction <add>, %6, %cst_2 [1] : vector<8x512xf32> to vector<8xf32>
    %8 = vector.shape_cast %7 : vector<8xf32> to vector<8x1xf32>
    %c0_3 = arith.constant 0 : index
    %c0_4 = arith.constant 0 : index
    %9 = vector.load %arg3[%c0_3, %c0_4] : memref<8x8xf32, #tpu.memory_space<vmem>>, vector<8x8xf32>
    %cst_5 = arith.constant dense<0.000000e+00> : vector<8x1xf32>
    %10 = tpu.matmul %9, %5, %cst_5 {dimension_numbers = #tpu.dot_dimension_numbers<[1], [0], [0], [1], [0, 0, 1, 1], [], []>} : vector<8x8xf32>, vector<8x1xf32>, vector<8x1xf32> -> vector<8x1xf32>
    %c0_6 = arith.constant 0 : index
    %c0_7 = arith.constant 0 : index
    %11 = vector.load %arg3[%c0_6, %c0_7] : memref<8x8xf32, #tpu.memory_space<vmem>>, vector<8x8xf32>
    %cst_8 = arith.constant dense<0.000000e+00> : vector<8x1xf32>
    %12 = tpu.matmul %11, %8, %cst_8 {dimension_numbers = #tpu.dot_dimension_numbers<[1], [0], [0], [1], [0, 0, 1, 1], [], []>} : vector<8x8xf32>, vector<8x1xf32>, vector<8x1xf32> -> vector<8x1xf32>
    %13 = arith.mulf %10, %10 : vector<8x1xf32>
    %14 = arith.subf %12, %13 : vector<8x1xf32>
    %cst_9 = arith.constant 9.99999974E-6 : f32
    %15 = vector.broadcast %cst_9 : f32 to vector<8x1xf32>
    %16 = arith.addf %14, %15 : vector<8x1xf32>
    %17 = math.rsqrt %16 : vector<8x1xf32>
    %c0_10 = arith.constant 0 : index
    %c0_11 = arith.constant 0 : index
    %18 = vector.load %arg4[%c0_10, %c0_11] : memref<8x3xf32, #tpu.memory_space<vmem>>, vector<8x1xf32>
    %c0_12 = arith.constant 0 : index
    %c1 = arith.constant 1 : index
    %19 = vector.load %arg4[%c0_12, %c1] : memref<8x3xf32, #tpu.memory_space<vmem>>, vector<8x1xf32>
    %c0_13 = arith.constant 0 : index
    %c2 = arith.constant 2 : index
    %20 = vector.load %arg4[%c0_13, %c2] : memref<8x3xf32, #tpu.memory_space<vmem>>, vector<8x1xf32>
    %21 = arith.mulf %17, %18 : vector<8x1xf32>
    %22 = arith.mulf %10, %21 : vector<8x1xf32>
    %23 = arith.subf %19, %22 : vector<8x1xf32>
    %24 = vector.broadcast %21 : vector<8x1xf32> to vector<8x512xf32>
    %25 = arith.mulf %3, %24 : vector<8x512xf32>
    %26 = vector.broadcast %23 : vector<8x1xf32> to vector<8x512xf32>
    %27 = arith.addf %25, %26 : vector<8x512xf32>
    %28 = arith.truncf %27 : vector<8x512xf32> to vector<8x512xbf16>
    %c0_14 = arith.constant 0 : index
    %c0_15 = arith.constant 0 : index
    %29 = vector.load %arg7[%c0_14, %c0_15] : memref<17x8xbf16, #tpu.memory_space<vmem>>, vector<17x8xbf16>
    %cst_16 = arith.constant dense<0.000000e+00> : vector<17x512xf32>
    %30 = tpu.matmul %29, %28, %cst_16 {dimension_numbers = #tpu.dot_dimension_numbers<[1], [0], [0], [1], [0, 0, 1, 1], [], []>} : vector<17x8xbf16>, vector<8x512xbf16>, vector<17x512xf32> -> vector<17x512xf32>
    %c0_17 = arith.constant 0 : index
    %c0_18 = arith.constant 0 : index
    %31 = vector.load %arg8[%c0_17, %c0_18] : memref<17x1xf32, #tpu.memory_space<vmem>>, vector<17x1xf32>
    %32 = vector.broadcast %31 : vector<17x1xf32> to vector<17x512xf32>
    %33 = arith.addf %30, %32 : vector<17x512xf32>
    %34 = vector.extract_strided_slice %33 {offsets = [0, 0], sizes = [8, 512], strides = [1, 1]} : vector<17x512xf32> to vector<8x512xf32>
    %35 = arith.truncf %34 : vector<8x512xf32> to vector<8x512xbf16>
    %36 = vector.extract_strided_slice %33 {offsets = [8, 0], sizes = [9, 512], strides = [1, 1]} : vector<17x512xf32> to vector<9x512xf32>
    %37 = arith.truncf %36 : vector<9x512xf32> to vector<9x512xbf16>
    %c0_19 = arith.constant 0 : index
    %c0_20 = arith.constant 0 : index
    %38 = arith.index_cast %1 : i32 to index
    %39 = vector.load %arg2[%c0_19, %c0_20, %38] : memref<1x8x512xf32, #tpu.memory_space<vmem>>, vector<1x8x256xf32>
    %40 = vector.shape_cast %39 : vector<1x8x256xf32> to vector<8x256xf32>
    %41 = vector.broadcast %21 : vector<8x1xf32> to vector<8x256xf32>
    %42 = arith.mulf %40, %41 : vector<8x256xf32>
    %43 = vector.broadcast %23 : vector<8x1xf32> to vector<8x256xf32>
    %44 = arith.addf %42, %43 : vector<8x256xf32>
    %45 = tpu.transpose %44, [1, 0] : vector<8x256xf32> -> vector<256x8xf32>
    %46 = arith.truncf %45 : vector<256x8xf32> to vector<256x8xbf16>
    %c0_21 = arith.constant 0 : index
    %c0_22 = arith.constant 0 : index
    %47 = vector.load %arg5[%c0_21, %c0_22] : memref<8x8xbf16, #tpu.memory_space<vmem>>, vector<8x8xbf16>
    %cst_23 = arith.constant dense<0.000000e+00> : vector<256x8xf32>
    %48 = tpu.matmul %46, %47, %cst_23 {dimension_numbers = #tpu.dot_dimension_numbers<[1], [0], [0], [1], [0, 0, 1, 1], [], []>} : vector<256x8xbf16>, vector<8x8xbf16>, vector<256x8xf32> -> vector<256x8xf32>
    %c0_24 = arith.constant 0 : index
    %c0_25 = arith.constant 0 : index
    %49 = vector.load %arg6[%c0_24, %c0_25] : memref<1x8xf32, #tpu.memory_space<vmem>>, vector<1x8xf32>
    %50 = vector.broadcast %49 : vector<1x8xf32> to vector<256x8xf32>
    %51 = arith.addf %48, %50 : vector<256x8xf32>
    %52 = arith.truncf %51 : vector<256x8xf32> to vector<256x8xbf16>
    %cst_26 = arith.constant dense<0.000000e+00> : vector<256x512xf32>
    %53 = tpu.matmul %52, %35, %cst_26 {dimension_numbers = #tpu.dot_dimension_numbers<[1], [0], [0], [1], [0, 0, 1, 1], [], []>} : vector<256x8xbf16>, vector<8x512xbf16>, vector<256x512xf32> -> vector<256x512xf32>
    %cst_27 = arith.constant dense<0xFF800000> : vector<256xf32>
    %54 = vector.multi_reduction <maximumf>, %53, %cst_27 [1] : vector<256x512xf32> to vector<256xf32>
    %55 = vector.shape_cast %54 : vector<256xf32> to vector<256x1xf32>
    %56 = vector.broadcast %55 : vector<256x1xf32> to vector<256x512xf32>
    %57 = arith.subf %53, %56 : vector<256x512xf32>
    %58 = math.exp %57 : vector<256x512xf32>
    %59 = arith.truncf %58 : vector<256x512xf32> to vector<256x512xbf16>
    %cst_28 = arith.constant dense<0.000000e+00> : vector<9x256xf32>
    %60 = tpu.matmul %37, %59, %cst_28 {dimension_numbers = #tpu.dot_dimension_numbers<[1], [1], [0], [0], [0, 0, 1, 0], [], []>} : vector<9x512xbf16>, vector<256x512xbf16>, vector<9x256xf32> -> vector<9x256xf32>
    %61 = vector.extract_strided_slice %60 {offsets = [8, 0], sizes = [1, 256], strides = [1, 1]} : vector<9x256xf32> to vector<1x256xf32>
    %62 = tpu.reciprocal %61 : vector<1x256xf32> -> vector<1x256xf32>
    %63 = vector.extract_strided_slice %60 {offsets = [0, 0], sizes = [8, 256], strides = [1, 1]} : vector<9x256xf32> to vector<8x256xf32>
    %64 = vector.broadcast %62 : vector<1x256xf32> to vector<8x256xf32>
    %65 = arith.mulf %63, %64 : vector<8x256xf32>
    %66 = arith.truncf %65 : vector<8x256xf32> to vector<8x256xbf16>
    %c0_29 = arith.constant 0 : index
    %c0_30 = arith.constant 0 : index
    %67 = vector.load %arg9[%c0_29, %c0_30] : memref<8x8xbf16, #tpu.memory_space<vmem>>, vector<8x8xbf16>
    %cst_31 = arith.constant dense<0.000000e+00> : vector<8x256xf32>
    %68 = tpu.matmul %67, %66, %cst_31 {dimension_numbers = #tpu.dot_dimension_numbers<[1], [0], [0], [1], [0, 0, 1, 1], [], []>} : vector<8x8xbf16>, vector<8x256xbf16>, vector<8x256xf32> -> vector<8x256xf32>
    %69 = vector.broadcast %20 : vector<8x1xf32> to vector<8x256xf32>
    %70 = arith.addf %68, %69 : vector<8x256xf32>
    %71 = arith.addf %70, %40 : vector<8x256xf32>
    %c0_32 = arith.constant 0 : index
    %c0_33 = arith.constant 0 : index
    %c0_34 = arith.constant 0 : index
    %72 = vector.load %arg10[%c0_32, %c0_33, %c0_34] : memref<1x8x256xf32, #tpu.memory_space<vmem>>, vector<1x8x256xf32>
    %73 = vector.shape_cast %72 : vector<1x8x256xf32> to vector<8x256xf32>
    %74 = vector.shape_cast %71 : vector<8x256xf32> to vector<1x8x256xf32>
    tpu.vector_store %arg10[%c0_32, %c0_33, %c0_34], %74 {strides = array<i32>} : memref<1x8x256xf32, #tpu.memory_space<vmem>>, vector<1x8x256xf32>,
    return
  }
  func.func @transform_0(%arg0: i32, %arg1: i32) -> (i32, i32, i32) {
    %c0_i32 = arith.constant 0 : i32
    %c0_i32_0 = arith.constant 0 : i32
    %c0_i32_1 = arith.constant 0 : i32
    return %arg0, %c0_i32, %c0_i32_0 : i32, i32, i32
  }
  func.func @transform_1(%arg0: i32, %arg1: i32) -> (i32, i32) {
    %c0_i32 = arith.constant 0 : i32
    %c0_i32_0 = arith.constant 0 : i32
    %c0_i32_1 = arith.constant 0 : i32
    return %c0_i32, %c0_i32_0 : i32, i32
  }
  func.func @transform_2(%arg0: i32, %arg1: i32) -> (i32, i32) {
    %c0_i32 = arith.constant 0 : i32
    %c0_i32_0 = arith.constant 0 : i32
    %c0_i32_1 = arith.constant 0 : i32
    return %c0_i32, %c0_i32_0 : i32, i32
  }
  func.func @transform_3(%arg0: i32, %arg1: i32) -> (i32, i32) {
    %c0_i32 = arith.constant 0 : i32
    %c0_i32_0 = arith.constant 0 : i32
    %c0_i32_1 = arith.constant 0 : i32
    return %c0_i32, %c0_i32_0 : i32, i32
  }
  func.func @transform_4(%arg0: i32, %arg1: i32) -> (i32, i32) {
    %c0_i32 = arith.constant 0 : i32
    %c0_i32_0 = arith.constant 0 : i32
    %c0_i32_1 = arith.constant 0 : i32
    return %c0_i32, %c0_i32_0 : i32, i32
  }
  func.func @transform_5(%arg0: i32, %arg1: i32) -> (i32, i32) {
    %c0_i32 = arith.constant 0 : i32
    %c0_i32_0 = arith.constant 0 : i32
    %c0_i32_1 = arith.constant 0 : i32
    return %c0_i32, %c0_i32_0 : i32, i32
  }
  func.func @transform_6(%arg0: i32, %arg1: i32) -> (i32, i32) {
    %c0_i32 = arith.constant 0 : i32
    %c0_i32_0 = arith.constant 0 : i32
    %c0_i32_1 = arith.constant 0 : i32
    return %c0_i32, %c0_i32_0 : i32, i32
  }
  func.func @transform_7(%arg0: i32, %arg1: i32) -> (i32, i32) {
    %c0_i32 = arith.constant 0 : i32
    %c0_i32_0 = arith.constant 0 : i32
    %c0_i32_1 = arith.constant 0 : i32
    return %c0_i32, %c0_i32_0 : i32, i32
  }
  func.func @transform_8(%arg0: i32, %arg1: i32) -> (i32, i32, i32) {
    %c0_i32 = arith.constant 0 : i32
    %c0_i32_0 = arith.constant 0 : i32
    return %arg0, %c0_i32, %arg1 : i32, i32, i32
  }
}

</mosaic_0001>

<llo_original>
// kernel: tpu_custom_call.1
$region0: #{tpu_custom_call.1}
  #allocation0 [shape = 'u32[]', space=smem, size = 0x4, offset = 0x4, fixed_abs, tag = 'smem constant byte address 0x4 - core index']
  #allocation1 [shape = 'u32[144,128]{1,0:T(1,128)}', space=vmem, size = 0x12000, scoped, tag = 'internal scratch']
  %s0 = inlined_call_operand.hbm [shape: f32[2,8,512], index: 0, kind: input, shape index: {}]
  %s1 = inlined_call_operand.vmem [shape: f32[8,8], index: 1, kind: input, shape index: {}]
  %s2 = inlined_call_operand.vmem [shape: f32[8,3], index: 2, kind: input, shape index: {}]
  %s3 = inlined_call_operand.vmem [shape: bf16[8,8], index: 3, kind: input, shape index: {}]
  %s4 = inlined_call_operand.vmem [shape: f32[1,8], index: 4, kind: input, shape index: {}]
  %s5 = inlined_call_operand.vmem [shape: bf16[17,8], index: 5, kind: input, shape index: {}]
  %s6 = inlined_call_operand.vmem [shape: f32[17,1], index: 6, kind: input, shape index: {}]
  %s7 = inlined_call_operand.vmem [shape: bf16[8,8], index: 7, kind: input, shape index: {}]
  %s8 = inlined_call_operand.hbm [shape: f32[2,8,512], index: 8, kind: output, shape index: {}]
  %s9 = sld [smem:[#allocation0]]
  $region69: #{tpu_custom_call.1} parent=0
    _
  %s11 = ssub.s32 1, %s9
  %s12 = scalar_select 0, %s11, %s9
  $region1: #{tpu_custom_call.1} parent=0
    #allocation2 [shape = 'u8[32768]{0}', space=vmem, size = 0x8000, scoped, tag = 'input window, operand 0']
    #allocation3 [shape = 's32[2]{0}', space=sflag, size = 0x8, scoped, tag = 'scoped memory for tpu_custom_call.1']
    #allocation4 [shape = 's32[2]{0}', space=sflag, size = 0x8, scoped, tag = 'scoped memory for tpu_custom_call.1']
    #allocation5 [shape = 'u8[16384]{0}', space=vmem, size = 0x4000, scoped, tag = 'output window, operand 0']
    %13 = vsyncpa [#allocation3], 0
    %s14 = scalar_lea.sflag [#allocation3], 1
    %15 = vsyncpa %s14, 0
    %16 = vsyncpa [#allocation4], 0
    %s17 = scalar_lea.sflag [#allocation4], 1
    %18 = vsyncpa %s17, 0
    loop: start=0, step=1, limit=6
    $region2: #{tpu_custom_call.1} parent=1 // loop_pre_header
      _
    $region3: #{tpu_custom_call.1} parent=1 // loop_header
      %s20 = sphi 0, %s24
      %p21 = scmp.ge.s32.totalorder %s20, 6
      %s27 = sphi 0, %s39
      %s28 = sphi 0, %s35
      %s29 = sphi 0, %s27
      %s30 = sphi 0, %s28
      %s31 = sphi 0, %s29
      %s32 = sphi 0, %s30
      %s42 = sphi 0, %s44
      %s45 = sphi 0, %s42
      %s46 = sphi 0, %s45
      %s62 = sphi 0, %s46
      %s66 = sphi 0, %s66
      %s68 = sphi 0, %s66
      %s69 = sphi 0, %s68
      %s83 = sphi 0, %s69
      %s87 = sphi 0, %s87
      %s89 = sphi 0, %s87
      %s90 = sphi 0, %s89
      %s104 = sphi 0, %s90
      %s108 = sphi 0, %s108
      %s110 = sphi 0, %s108
      %s111 = sphi 0, %s110
      %s125 = sphi 0, %s111
      %s129 = sphi 0, %s129
      %s131 = sphi 0, %s129
      %s132 = sphi 0, %s131
      %s146 = sphi 0, %s132
      %s150 = sphi 0, %s150
      %s152 = sphi 0, %s150
      %s153 = sphi 0, %s152
      %s167 = sphi 0, %s153
      %s171 = sphi 0, %s171
      %s173 = sphi 0, %s171
      %s174 = sphi 0, %s173
      %s188 = sphi 0, %s174
      %s192 = sphi 0, %s192
      %s194 = sphi 0, %s192
      %s195 = sphi 0, %s194
      %s209 = sphi 0, %s195
      %s217 = sphi 0, %s219
      %s220 = sphi 0, %s217
      %s221 = sphi 0, %s220
      %s237 = sphi 0, %s221
    $region4: #{tpu_custom_call.1} parent=1 // loop_header_branch
      %23 = sbr.rel (%p21) target = $region8
    $region5: #{tpu_custom_call.1} parent=1 // loop_body
      %s25 = ssub.s32 %s20, 1
      %s26 = ssub.s32 %s20, 2
      %s33 = sadd.s32 1, %s28
      %p34 = scmp.ge.s32.totalorder %s33, 2
      %s35 = scalar_select %p34, 0, %s33
      %s36 = sadd.s32 1, %s27
      %s37 = scalar_select %p34, %s36, %s27
      %p38 = scmp.ge.s32.totalorder %s37, 2
      %s39 = scalar_select %p38, 0, %s37
      %s40 = ssub.s32 %s27, %s39
      %p41 = scmp.eq.s32.totalorder %s40, 0
      %s43 = sadd.s32 %s42, 1
      %s44 = scalar_select %p41, %s42, %s43
      %p47 = pneg %p41
      %p48 = scmp.eq.s32.totalorder %s20, 3
      %p49 = por %p47, %p48
      %p50 = scmp.ne.s32.totalorder %s42, %s45
      %p51 = scmp.eq.s32.totalorder %s20, 0
      %p52 = por %p50, %p51
      %p53 = scmp.ne.s32.totalorder %s42, %s45
      %p54 = scmp.eq.s32.totalorder %s25, 3
      %p55 = por %p53, %p54
      %p56 = scmp.ne.s32.totalorder %s45, %s46
      %p57 = scmp.eq.s32.totalorder %s25, 0
      %p58 = por %p56, %p57
      %p59 = scmp.ne.s32.totalorder %s45, %s46
      %p60 = scmp.eq.s32.totalorder %s26, 3
      %p61 = por %p59, %p60
      %p63 = scmp.ne.s32.totalorder %s46, %s62
      %p64 = scmp.eq.s32.totalorder %s26, 0
      %p65 = por %p63, %p64
      %s67 = sadd.s32 %s66, 1
      %p70 = scmp.eq.s32.totalorder %s20, 3
      %p71 = scmp.ne.s32.totalorder %s66, %s68
      %p72 = scmp.eq.s32.totalorder %s20, 0
      %p73 = por %p71, %p72
      %p74 = scmp.ne.s32.totalorder %s66, %s68
      %p75 = scmp.eq.s32.totalorder %s25, 3
      %p76 = por %p74, %p75
      %p77 = scmp.ne.s32.totalorder %s68, %s69
      %p78 = scmp.eq.s32.totalorder %s25, 0
      %p79 = por %p77, %p78
      %p80 = scmp.ne.s32.totalorder %s68, %s69
      %p81 = scmp.eq.s32.totalorder %s26, 3
      %p82 = por %p80, %p81
      %p84 = scmp.ne.s32.totalorder %s69, %s83
      %p85 = scmp.eq.s32.totalorder %s26, 0
      %p86 = por %p84, %p85
      %s88 = sadd.s32 %s87, 1
      %p91 = scmp.eq.s32.totalorder %s20, 3
      %p92 = scmp.ne.s32.totalorder %s87, %s89
      %p93 = scmp.eq.s32.totalorder %s20, 0
      %p94 = por %p92, %p93
      %p95 = scmp.ne.s32.totalorder %s87, %s89
      %p96 = scmp.eq.s32.totalorder %s25, 3
      %p97 = por %p95, %p96
      %p98 = scmp.ne.s32.totalorder %s89, %s90
      %p99 = scmp.eq.s32.totalorder %s25, 0
      %p100 = por %p98, %p99
      %p101 = scmp.ne.s32.totalorder %s89, %s90
      %p102 = scmp.eq.s32.totalorder %s26, 3
      %p103 = por %p101, %p102
      %p105 = scmp.ne.s32.totalorder %s90, %s104
      %p106 = scmp.eq.s32.totalorder %s26, 0
      %p107 = por %p105, %p106
      %s109 = sadd.s32 %s108, 1
      %p112 = scmp.eq.s32.totalorder %s20, 3
      %p113 = scmp.ne.s32.totalorder %s108, %s110
      %p114 = scmp.eq.s32.totalorder %s20, 0
      %p115 = por %p113, %p114
      %p116 = scmp.ne.s32.totalorder %s108, %s110
      %p117 = scmp.eq.s32.totalorder %s25, 3
      %p118 = por %p116, %p117
      %p119 = scmp.ne.s32.totalorder %s110, %s111
      %p120 = scmp.eq.s32.totalorder %s25, 0
      %p121 = por %p119, %p120
      %p122 = scmp.ne.s32.totalorder %s110, %s111
      %p123 = scmp.eq.s32.totalorder %s26, 3
      %p124 = por %p122, %p123
      %p126 = scmp.ne.s32.totalorder %s111, %s125
      %p127 = scmp.eq.s32.totalorder %s26, 0
      %p128 = por %p126, %p127
      %s130 = sadd.s32 %s129, 1
      %p133 = scmp.eq.s32.totalorder %s20, 3
      %p134 = scmp.ne.s32.totalorder %s129, %s131
      %p135 = scmp.eq.s32.totalorder %s20, 0
      %p136 = por %p134, %p135
      %p137 = scmp.ne.s32.totalorder %s129, %s131
      %p138 = scmp.eq.s32.totalorder %s25, 3
      %p139 = por %p137, %p138
      %p140 = scmp.ne.s32.totalorder %s131, %s132
      %p141 = scmp.eq.s32.totalorder %s25, 0
      %p142 = por %p140, %p141
      %p143 = scmp.ne.s32.totalorder %s131, %s132
      %p144 = scmp.eq.s32.totalorder %s26, 3
      %p145 = por %p143, %p144
      %p147 = scmp.ne.s32.totalorder %s132, %s146
      %p148 = scmp.eq.s32.totalorder %s26, 0
      %p149 = por %p147, %p148
      %s151 = sadd.s32 %s150, 1
      %p154 = scmp.eq.s32.totalorder %s20, 3
      %p155 = scmp.ne.s32.totalorder %s150, %s152
      %p156 = scmp.eq.s32.totalorder %s20, 0
      %p157 = por %p155, %p156
      %p158 = scmp.ne.s32.totalorder %s150, %s152
      %p159 = scmp.eq.s32.totalorder %s25, 3
      %p160 = por %p158, %p159
      %p161 = scmp.ne.s32.totalorder %s152, %s153
      %p162 = scmp.eq.s32.totalorder %s25, 0
      %p163 = por %p161, %p162
      %p164 = scmp.ne.s32.totalorder %s152, %s153
      %p165 = scmp.eq.s32.totalorder %s26, 3
      %p166 = por %p164, %p165
      %p168 = scmp.ne.s32.totalorder %s153, %s167
      %p169 = scmp.eq.s32.totalorder %s26, 0
      %p170 = por %p168, %p169
      %s172 = sadd.s32 %s171, 1
      %p175 = scmp.eq.s32.totalorder %s20, 3
      %p176 = scmp.ne.s32.totalorder %s171, %s173
      %p177 = scmp.eq.s32.totalorder %s20, 0
      %p178 = por %p176, %p177
      %p179 = scmp.ne.s32.totalorder %s171, %s173
      %p180 = scmp.eq.s32.totalorder %s25, 3
      %p181 = por %p179, %p180
      %p182 = scmp.ne.s32.totalorder %s173, %s174
      %p183 = scmp.eq.s32.totalorder %s25, 0
      %p184 = por %p182, %p183
      %p185 = scmp.ne.s32.totalorder %s173, %s174
      %p186 = scmp.eq.s32.totalorder %s26, 3
      %p187 = por %p185, %p186
      %p189 = scmp.ne.s32.totalorder %s174, %s188
      %p190 = scmp.eq.s32.totalorder %s26, 0
      %p191 = por %p189, %p190
      %s193 = sadd.s32 %s192, 1
      %p196 = scmp.eq.s32.totalorder %s20, 3
      %p197 = scmp.ne.s32.totalorder %s192, %s194
      %p198 = scmp.eq.s32.totalorder %s20, 0
      %p199 = por %p197, %p198
      %p200 = scmp.ne.s32.totalorder %s192, %s194
      %p201 = scmp.eq.s32.totalorder %s25, 3
      %p202 = por %p200, %p201
      %p203 = scmp.ne.s32.totalorder %s194, %s195
      %p204 = scmp.eq.s32.totalorder %s25, 0
      %p205 = por %p203, %p204
      %p206 = scmp.ne.s32.totalorder %s194, %s195
      %p207 = scmp.eq.s32.totalorder %s26, 3
      %p208 = por %p206, %p207
      %p210 = scmp.ne.s32.totalorder %s195, %s209
      %p211 = scmp.eq.s32.totalorder %s26, 0
      %p212 = por %p210, %p211
      %s213 = ssub.s32 %s27, %s39
      %s214 = ssub.s32 %s28, %s35
      %s215 = sor.u32 %s213, %s214
      %p216 = scmp.eq.s32.totalorder %s215, 0
      %s218 = sadd.s32 %s217, 1
      %s219 = scalar_select %p216, %s217, %s218
      %p222 = pneg %p216
      %p223 = scmp.eq.s32.totalorder %s20, 3
      %p224 = por %p222, %p223
      %p225 = scmp.ne.s32.totalorder %s217, %s220
      %p226 = scmp.eq.s32.totalorder %s20, 0
      %p227 = por %p225, %p226
      %p228 = scmp.ne.s32.totalorder %s217, %s220
      %p229 = scmp.eq.s32.totalorder %s25, 3
      %p230 = por %p228, %p229
      %p231 = scmp.ne.s32.totalorder %s220, %s221
      %p232 = scmp.eq.s32.totalorder %s25, 0
      %p233 = por %p231, %p232
      %p234 = scmp.ne.s32.totalorder %s220, %s221
      %p235 = scmp.eq.s32.totalorder %s26, 3
      %p236 = por %p234, %p235
      %p238 = scmp.ne.s32.totalorder %s221, %s237
      %p239 = scmp.eq.s32.totalorder %s26, 0
      %p240 = por %p238, %p239
      %p241 = scmp.le.s32.totalorder 1, %s20
      %p242 = scmp.lt.s32.totalorder %s20, 5
      %p243 = pnand %p241, %p242
      %p244 = pneg %p243
      // Predicated region
      $region9: #{tpu_custom_call.1} parent=5 // pred_check
        _
      $region10: #{tpu_custom_call.1} parent=5 // pred_check_branch
        %246 = sbr.rel (%p243) target = $region12
      $region11: #{tpu_custom_call.1} parent=5 // pred_region
        %s247 = ssub.s32 %s20, 1
        // Predicated region
        $region13: #{tpu_custom_call.1} parent=11 // pred_check
          %p248 = pneg %p79
        $region14: #{tpu_custom_call.1} parent=11 // pred_check_branch
          %250 = sbr.rel (%p248) target = $region16
        $region15: #{tpu_custom_call.1} parent=11 // pred_region
          _
        $region16: #{tpu_custom_call.1} parent=11 // pred_fallthru
          _
        // Predicated region
        $region17: #{tpu_custom_call.1} parent=11 // pred_check
          %p251 = pneg %p100
        $region18: #{tpu_custom_call.1} parent=11 // pred_check_branch
          %253 = sbr.rel (%p251) target = $region20
        $region19: #{tpu_custom_call.1} parent=11 // pred_region
          _
        $region20: #{tpu_custom_call.1} parent=11 // pred_fallthru
          _
        // Predicated region
        $region21: #{tpu_custom_call.1} parent=11 // pred_check
          %p254 = pneg %p121
        $region22: #{tpu_custom_call.1} parent=11 // pred_check_branch
          %256 = sbr.rel (%p254) target = $region24
        $region23: #{tpu_custom_call.1} parent=11 // pred_region
          _
        $region24: #{tpu_custom_call.1} parent=11 // pred_fallthru
          _
        // Predicated region
        $region25: #{tpu_custom_call.1} parent=11 // pred_check
          %p257 = pneg %p142
        $region26: #{tpu_custom_call.1} parent=11 // pred_check_branch
          %259 = sbr.rel (%p257) target = $region28
        $region27: #{tpu_custom_call.1} parent=11 // pred_region
          _
        $region28: #{tpu_custom_call.1} parent=11 // pred_fallthru
          _
        // Predicated region
        $region29: #{tpu_custom_call.1} parent=11 // pred_check
          %p260 = pneg %p163
        $region30: #{tpu_custom_call.1} parent=11 // pred_check_branch
          %262 = sbr.rel (%p260) target = $region32
        $region31: #{tpu_custom_call.1} parent=11 // pred_region
          _
        $region32: #{tpu_custom_call.1} parent=11 // pred_fallthru
          _
        // Predicated region
        $region33: #{tpu_custom_call.1} parent=11 // pred_check
          %p263 = pneg %p184
        $region34: #{tpu_custom_call.1} parent=11 // pred_check_branch
          %265 = sbr.rel (%p263) target = $region36
        $region35: #{tpu_custom_call.1} parent=11 // pred_region
          _
        $region36: #{tpu_custom_call.1} parent=11 // pred_fallthru
          _
        // Predicated region
        $region37: #{tpu_custom_call.1} parent=11 // pred_check
          %p266 = pneg %p205
        $region38: #{tpu_custom_call.1} parent=11 // pred_check_branch
          %268 = sbr.rel (%p266) target = $region40
        $region39: #{tpu_custom_call.1} parent=11 // pred_region
          _
        $region40: #{tpu_custom_call.1} parent=11 // pred_fallthru
          _
      $region12: #{tpu_custom_call.1} parent=5 // pred_fallthru
        _
      %p269 = scmp.lt.s32.totalorder %s20, 4
      // Predicated region
      $region41: #{tpu_custom_call.1} parent=5 // pred_check
        %p270 = pneg %p269
      $region42: #{tpu_custom_call.1} parent=5 // pred_check_branch
        %272 = sbr.rel (%p270) target = $region44
      $region43: #{tpu_custom_call.1} parent=5 // pred_region
        // Predicated region
        $region45: #{tpu_custom_call.1} parent=43 // pred_check
          %p273 = pneg %p52
        $region46: #{tpu_custom_call.1} parent=43 // pred_check_branch
          %275 = sbr.rel (%p273) target = $region48
        $region47: #{tpu_custom_call.1} parent=43 // pred_region
          %s276 = sand.u32 %s42, 1
          %s277 = scalar_lea.sflag [#allocation3], %s276
          %s278 = sand.u32 %s42, 1
          %s279 = smul.addr %s278, 32
          %s280 = scalar_lea.vmem [#allocation2], %s279
          %s282 = ssub.s32 512, 512
          %283 = vsyncadd %s277, %s282
          %s284 = smul.addr %s27, 4
          %s285 = smul.addr %s284, 128
          %s286 = scalar_lea.hbm %s0, %s285
          %s288 = sshll.u32 %s280, 4
          %s289 = int_to_ptr.vmem [resolvable:$true] %s288
          %291 = dma.hbm_to_vmem [thread:$0]  %s286, 512, %s289, %s277
        $region48: #{tpu_custom_call.1} parent=43 // pred_fallthru
          _
      $region44: #{tpu_custom_call.1} parent=5 // pred_fallthru
        _
      %p292 = scmp.le.s32.totalorder 1, %s20
      %p293 = scmp.lt.s32.totalorder %s20, 5
      %p294 = pnand %p292, %p293
      %p295 = pneg %p294
      // Predicated region
      $region49: #{tpu_custom_call.1} parent=5 // pred_check
        _
      $region50: #{tpu_custom_call.1} parent=5 // pred_check_branch
        %297 = sbr.rel (%p294) target = $region52
      $region51: #{tpu_custom_call.1} parent=5 // pred_region
        %s298 = ssub.s32 %s20, 1
        %s299 = sand.u32 %s45, 1
        %s300 = scalar_lea.sflag [#allocation3], %s299
        %s301 = sand.u32 %s45, 1
        %s302 = smul.addr %s301, 32
        %s303 = scalar_lea.vmem [#allocation2], %s302
        // Predicated region
        $region53: #{tpu_custom_call.1} parent=51 // pred_check
          %p304 = pneg %p58
        $region54: #{tpu_custom_call.1} parent=51 // pred_check_branch
          %306 = sbr.rel (%p304) target = $region56
        $region55: #{tpu_custom_call.1} parent=51 // pred_region
          %307 = dma.done %s300, 512
        $region56: #{tpu_custom_call.1} parent=51 // pred_fallthru
          _
        %s308 = sand.u32 %s45, 1
        %s309 = scalar_lea.sflag [#allocation3], %s308
        %s310 = sand.u32 %s45, 1
        %s311 = smul.addr %s310, 32
        %s312 = scalar_lea.vmem [#allocation2], %s311
        %p313 = pneg %p58
        %p314 = pneg %p55
        %p315 = pneg %p79
        %p316 = pneg %p76
        %p317 = pneg %p100
        %p318 = pneg %p97
        %p319 = pneg %p121
        %p320 = pneg %p118
        %p321 = pneg %p142
        %p322 = pneg %p139
        %p323 = pneg %p163
        %p324 = pneg %p160
        %p325 = pneg %p184
        %p326 = pneg %p181
        %p327 = pneg %p205
        %p328 = pneg %p202
        %p329 = pneg %p233
        %p330 = pneg %p230
        %s331 = sand.u32 %s220, 1
        %s332 = scalar_lea.sflag [#allocation4], %s331
        %s333 = sand.u32 %s220, 1
        %s334 = smul.addr %s333, 16
        %s335 = scalar_lea.vmem [#allocation5], %s334
        %s336 = smul.u32 2, %s30
        %s338 = smul.u32 %s30, 256
        %v339 = vld [vmem:[%s303] sm:$0xff]
        %v340 = vld [vmem:[%s303 + $0x8] sm:$0xff]
        %v341 = vld [vmem:[%s303 + $0x10] sm:$0xff]
        %v342 = vld [vmem:[%s303 + $0x18] sm:$0xff]
        %v343 = vadd.f32 %v339, %v340
        %v344 = vadd.f32 %v343, %v341
        %v345 = vadd.f32 %v344, %v342
        %346 = vadd.xlane.f32.xlu0 %v345
        %v347 = vpop.xlane.xlu0 %346
        %v348 = vmul.f32 %v339, %v339
        %v349 = vmul.f32 %v340, %v340
        %v350 = vmul.f32 %v341, %v341
        %v351 = vmul.f32 %v342, %v342
        %v352 = vadd.f32 %v348, %v349
        %v353 = vadd.f32 %v352, %v350
        %v354 = vadd.f32 %v353, %v351
        %355 = vadd.xlane.f32.xlu0 %v354
        %v356 = vpop.xlane.xlu0 %355
        %v357 = vld [vmem:[%s1] sm:$0xff]
        %vm358 = vcmask 64512
        %v360 = vsel %vm358, %v357, 0
        %362 = vmatprep.subr.mxu0 0.0
        %363 = vmatpush1.msra.mxu0 %v347
        %364 = vmatprep.subr.mxu0 0.0
        %365 = vmatpush1.msra.mxu0 0.0
        %366 = vmatprep.subr.mxu0 0.0
        %367 = vmatpush1.msra.mxu0 0.0
        %368 = vmatprep.subr.mxu0 0.0
        %369 = vmatpush1.msra.mxu0 0.0
        %370 = vmatprep.subr.mxu0 0.0
        %371 = vmatpush1.msra.mxu0 0.0
        %372 = vmatprep.subr.mxu0 0.0
        %373 = vmatpush1.msra.mxu0 0.0
        %374 = vmatprep.subr.mxu0 0.0
        %375 = vmatpush1.msra.mxu0 0.0
        %376 = vmatprep.subr.mxu0 0.0
        %377 = vmatpush1.msra.mxu0 0.0
        %378 = vmatprep.subr.mxu0 0.0
        %379 = vmatpush1.msra.mxu0 0.0
        %380 = vmatprep.subr.mxu0 0.0
        %381 = vmatpush1.msra.mxu0 0.0
        %382 = vmatprep.subr.mxu0 0.0
        %383 = vmatpush1.msra.mxu0 0.0
        %384 = vmatprep.subr.mxu0 0.0
        %385 = vmatpush1.msra.mxu0 0.0
        %386 = vmatprep.subr.mxu0 0.0
        %387 = vmatpush1.msra.mxu0 0.0
        %388 = vmatprep.subr.mxu0 0.0
        %389 = vmatpush1.msra.mxu0 0.0
        %390 = vmatprep.subr.mxu0 0.0
        %391 = vmatpush1.msra.mxu0 0.0
        %392 = vmatprep.subr.mxu0 0.0
        %393 = vmatpush1.msra.mxu0 0.0
        %394 = vmatprep.subr.mxu0 0.0
        %395 = vmatpush1.msra.mxu0 0.0
        %396 = vmatprep.subr.mxu0 0.0
        %397 = vmatpush1.msra.mxu0 0.0
        %398 = vmatprep.subr.mxu0 0.0
        %399 = vmatpush1.msra.mxu0 0.0
        %400 = vmatprep.subr.mxu0 0.0
        %401 = vmatpush1.msra.mxu0 0.0
        %402 = vmatprep.subr.mxu0 0.0
        %403 = vmatpush1.msra.mxu0 0.0
        %404 = vmatprep.subr.mxu0 0.0
        %405 = vmatpush1.msra.mxu0 0.0
        %406 = vmatprep.subr.mxu0 0.0
        %407 = vmatpush1.msra.mxu0 0.0
        %408 = vmatprep.subr.mxu0 0.0
        %409 = vmatpush1.msra.mxu0 0.0
        %410 = vmatprep.subr.mxu0 0.0
        %411 = vmatpush1.msra.mxu0 0.0
        %412 = vmatprep.subr.mxu0 0.0
        %413 = vmatpush1.msra.mxu0 0.0
        %414 = vmatprep.subr.mxu0 0.0
        %415 = vmatpush1.msra.mxu0 0.0
        %416 = vmatprep.subr.mxu0 0.0
        %417 = vmatpush1.msra.mxu0 0.0
        %418 = vmatprep.subr.mxu0 0.0
        %419 = vmatpush1.msra.mxu0 0.0
        %420 = vmatprep.subr.mxu0 0.0
        %421 = vmatpush1.msra.mxu0 0.0
        %422 = vmatprep.subr.mxu0 0.0
        %423 = vmatpush1.msra.mxu0 0.0
        %424 = vmatprep.subr.mxu0 0.0
        %425 = vmatpush1.msra.mxu0 0.0
        %426 = vmatprep.mubr.f32.mxu0 0.0
        %427 = vmatmul.mubr.f32.gmra.mrb[0].mxu0 %v360
        %v428 = vpop.f32.mrb[0].mxu0
        %v429 = vadd.f32 0.0, %v428
        %v430 = vpop.f32.mrb[0].mxu0
        %431 = vdwg.mxu0
        %432 = vmatprep.subr.mxu0 0.0
        %433 = vmatpush1.msra.mxu0 %v356
        %434 = vmatprep.subr.mxu0 0.0
        %435 = vmatpush1.msra.mxu0 0.0
        %436 = vmatprep.subr.mxu0 0.0
        %437 = vmatpush1.msra.mxu0 0.0
        %438 = vmatprep.subr.mxu0 0.0
        %439 = vmatpush1.msra.mxu0 0.0
        %440 = vmatprep.subr.mxu0 0.0
        %441 = vmatpush1.msra.mxu0 0.0
        %442 = vmatprep.subr.mxu0 0.0
        %443 = vmatpush1.msra.mxu0 0.0
        %444 = vmatprep.subr.mxu0 0.0
        %445 = vmatpush1.msra.mxu0 0.0
        %446 = vmatprep.subr.mxu0 0.0
        %447 = vmatpush1.msra.mxu0 0.0
        %448 = vmatprep.subr.mxu0 0.0
        %449 = vmatpush1.msra.mxu0 0.0
        %450 = vmatprep.subr.mxu0 0.0
        %451 = vmatpush1.msra.mxu0 0.0
        %452 = vmatprep.subr.mxu0 0.0
        %453 = vmatpush1.msra.mxu0 0.0
        %454 = vmatprep.subr.mxu0 0.0
        %455 = vmatpush1.msra.mxu0 0.0
        %456 = vmatprep.subr.mxu0 0.0
        %457 = vmatpush1.msra.mxu0 0.0
        %458 = vmatprep.subr.mxu0 0.0
        %459 = vmatpush1.msra.mxu0 0.0
        %460 = vmatprep.subr.mxu0 0.0
        %461 = vmatpush1.msra.mxu0 0.0
        %462 = vmatprep.subr.mxu0 0.0
        %463 = vmatpush1.msra.mxu0 0.0
        %464 = vmatprep.subr.mxu0 0.0
        %465 = vmatpush1.msra.mxu0 0.0
        %466 = vmatprep.subr.mxu0 0.0
        %467 = vmatpush1.msra.mxu0 0.0
        %468 = vmatprep.subr.mxu0 0.0
        %469 = vmatpush1.msra.mxu0 0.0
        %470 = vmatprep.subr.mxu0 0.0
        %471 = vmatpush1.msra.mxu0 0.0
        %472 = vmatprep.subr.mxu0 0.0
        %473 = vmatpush1.msra.mxu0 0.0
        %474 = vmatprep.subr.mxu0 0.0
        %475 = vmatpush1.msra.mxu0 0.0
        %476 = vmatprep.subr.mxu0 0.0
        %477 = vmatpush1.msra.mxu0 0.0
        %478 = vmatprep.subr.mxu0 0.0
        %479 = vmatpush1.msra.mxu0 0.0
        %480 = vmatprep.subr.mxu0 0.0
        %481 = vmatpush1.msra.mxu0 0.0
        %482 = vmatprep.subr.mxu0 0.0
        %483 = vmatpush1.msra.mxu0 0.0
        %484 = vmatprep.subr.mxu0 0.0
        %485 = vmatpush1.msra.mxu0 0.0
        %486 = vmatprep.subr.mxu0 0.0
        %487 = vmatpush1.msra.mxu0 0.0
        %488 = vmatprep.subr.mxu0 0.0
        %489 = vmatpush1.msra.mxu0 0.0
        %490 = vmatprep.subr.mxu0 0.0
        %491 = vmatpush1.msra.mxu0 0.0
        %492 = vmatprep.subr.mxu0 0.0
        %493 = vmatpush1.msra.mxu0 0.0
        %494 = vmatprep.subr.mxu0 0.0
        %495 = vmatpush1.msra.mxu0 0.0
        %496 = vmatprep.mubr.f32.mxu0 0.0
        %497 = vmatmul.mubr.f32.gmra.mrb[0].mxu0 %v360
        %v498 = vpop.f32.mrb[0].mxu0
        %v499 = vadd.f32 0.0, %v498
        %v500 = vpop.f32.mrb[0].mxu0
        %501 = vdwg.mxu0
        %v502 = vmul.f32 %v429, %v429
        %v503 = vsub.f32 %v499, %v502
        %v504 = vadd.f32 %v503, 1e-05
        %v505 = vrsqrt.pop %v504
        %v506 = vld [vmem:[%s2] sm:$0xff]
        %v507 = vmul.f32 %v505, %v506
        %v508 = vmul.f32 %v429, %v507
        %510 = vrot.lane.b32.xlu0 %v508, 1
        %v511 = vpop.permute.xlu0 %510
        %v513 = vsub.f32 %v506, %v511
        %515 = vset.pattern.permute.xlu0 0
        %516 = vperm.xlu0 %515, %v507
        %v517 = vpop.permute.xlu0 %516
        %v519 = vmul.f32 %v339, %v517
        %v520 = vmul.f32 %v340, %v517
        %v521 = vmul.f32 %v341, %v517
        %v522 = vmul.f32 %v342, %v517
        %524 = vset.pattern.permute.xlu0 1
        %525 = vperm.xlu0 %524, %v513
        %v526 = vpop.permute.xlu0 %525
        %v528 = vadd.f32 %v519, %v526
        %v529 = vadd.f32 %v520, %v526
        %v530 = vadd.f32 %v521, %v526
        %v531 = vadd.f32 %v522, %v526
        %v532 = vpack.c.bf16 %v528, %v528
        %v533 = vpack.c.bf16 %v529, %v529
        %v534 = vpack.c.bf16 %v530, %v530
        %v535 = vpack.c.bf16 %v531, %v531
        %v536 = vld [vmem:[%s5] sm:$0xf]
        %v537 = vld [vmem:[%s5 + $0x4] sm:$0xf]
        %v538 = vld [vmem:[%s5 + $0x8] sm:$0x1]
        %v539 = vld [vmem:[%s6] sm:$0xff]
        %v540 = vld [vmem:[%s6 + $0x8] sm:$0xff]
        %v541 = vld [vmem:[%s6 + $0x10] sm:$0x1]
        %543 = vset.pattern.permute.xlu0 0
        %544 = vperm.xlu0 %543, %v539
        %v545 = vpop.permute.xlu0 %544
        %548 = vset.pattern.permute.xlu0 0
        %549 = vperm.xlu0 %548, %v540
        %v550 = vpop.permute.xlu0 %549
        %553 = vset.pattern.permute.xlu0 0
        %554 = vperm.xlu0 %553, %v541
        %v555 = vpop.permute.xlu0 %554
        %v560 = vunpack.c.l.b16 %v536
        %v561 = vunpack.c.l.b16 %v537
        %v562 = vunpack.c.l.b16 %v538
        %v563 = vpack.c.b16 %v561, %v560
        %v564 = vpack.c.b16 %v562, %v562
        %v566 = vsel %vm358, %v563, 0
        %v569 = vsel %vm358, %v564, 0
        %vm571 = vcmask 1043456
        %v573 = vsel %vm571, %v532, 0
        %v576 = vsel %vm571, %v533, 0
        %v579 = vsel %vm571, %v534, 0
        %v582 = vsel %vm571, %v535, 0
        %584 = vmatprep.subr.bf16.mxu0 %v576
        %585 = vmatpush1.bf16.msra.mxu0 %v573
        %586 = vmatprep.subr.bf16.mxu0 0
        %587 = vmatpush1.bf16.msra.mxu0 0
        %588 = vmatprep.subr.bf16.mxu0 0
        %589 = vmatpush1.bf16.msra.mxu0 0
        %590 = vmatprep.subr.bf16.mxu0 0
        %591 = vmatpush1.bf16.msra.mxu0 0
        %592 = vmatprep.subr.bf16.mxu0 0
        %593 = vmatpush1.bf16.msra.mxu0 0
        %594 = vmatprep.subr.bf16.mxu0 0
        %595 = vmatpush1.bf16.msra.mxu0 0
        %596 = vmatprep.subr.bf16.mxu0 0
        %597 = vmatpush1.bf16.msra.mxu0 0
        %598 = vmatprep.subr.bf16.mxu0 0
        %599 = vmatpush1.bf16.msra.mxu0 0
        %600 = vmatprep.subr.bf16.mxu0 0
        %601 = vmatpush1.bf16.msra.mxu0 0
        %602 = vmatprep.subr.bf16.mxu0 0
        %603 = vmatpush1.bf16.msra.mxu0 0
        %604 = vmatprep.subr.bf16.mxu0 0
        %605 = vmatpush1.bf16.msra.mxu0 0
        %606 = vmatprep.subr.bf16.mxu0 0
        %607 = vmatpush1.bf16.msra.mxu0 0
        %608 = vmatprep.subr.bf16.mxu0 0
        %609 = vmatpush1.bf16.msra.mxu0 0
        %610 = vmatprep.subr.bf16.mxu0 0
        %611 = vmatpush1.bf16.msra.mxu0 0
        %612 = vmatprep.subr.bf16.mxu0 0
        %613 = vmatpush1.bf16.msra.mxu0 0
        %614 = vmatprep.subr.bf16.mxu0 0
        %615 = vmatpush1.bf16.msra.mxu0 0
        %616 = vmatprep.mubr.bf16.mxu0 0
        %617 = vmatmul.mubr.bf16.gmra.mrb[0].mxu0 %v566
        %v618 = vpop.f32.mrb[0].mxu0
        %v619 = vadd.f32 %v545, %v618
        %v620 = vpop.f32.mrb[0].mxu0
        %v621 = vadd.f32 %v545, %v620
        %v622 = vpop.f32.mrb[0].mxu0
        %v623 = vadd.f32 %v550, %v622
        %v624 = vpop.f32.mrb[0].mxu0
        %v625 = vadd.f32 %v550, %v624
        %626 = vmatprep.mubr.bf16.mxu0 0
        %627 = vmatmul.mubr.bf16.gmra.mrb[0].mxu0 %v569
        %v628 = vpop.f32.mrb[0].mxu0
        %v629 = vadd.f32 %v555, %v628
        %v630 = vpop.f32.mrb[0].mxu0
        %v631 = vadd.f32 %v555, %v630
        %v632 = vpop.f32.mrb[0].mxu0
        %v633 = vpop.f32.mrb[0].mxu0
        %634 = vdwg.mxu0
        %635 = vmatprep.subr.bf16.mxu0 %v582
        %636 = vmatpush1.bf16.msra.mxu0 %v579
        %637 = vmatprep.subr.bf16.mxu0 0
        %638 = vmatpush1.bf16.msra.mxu0 0
        %639 = vmatprep.subr.bf16.mxu0 0
        %640 = vmatpush1.bf16.msra.mxu0 0
        %641 = vmatprep.subr.bf16.mxu0 0
        %642 = vmatpush1.bf16.msra.mxu0 0
        %643 = vmatprep.subr.bf16.mxu0 0
        %644 = vmatpush1.bf16.msra.mxu0 0
        %645 = vmatprep.subr.bf16.mxu0 0
        %646 = vmatpush1.bf16.msra.mxu0 0
        %647 = vmatprep.subr.bf16.mxu0 0
        %648 = vmatpush1.bf16.msra.mxu0 0
        %649 = vmatprep.subr.bf16.mxu0 0
        %650 = vmatpush1.bf16.msra.mxu0 0
        %651 = vmatprep.subr.bf16.mxu0 0
        %652 = vmatpush1.bf16.msra.mxu0 0
        %653 = vmatprep.subr.bf16.mxu0 0
        %654 = vmatpush1.bf16.msra.mxu0 0
        %655 = vmatprep.subr.bf16.mxu0 0
        %656 = vmatpush1.bf16.msra.mxu0 0
        %657 = vmatprep.subr.bf16.mxu0 0
        %658 = vmatpush1.bf16.msra.mxu0 0
        %659 = vmatprep.subr.bf16.mxu0 0
        %660 = vmatpush1.bf16.msra.mxu0 0
        %661 = vmatprep.subr.bf16.mxu0 0
        %662 = vmatpush1.bf16.msra.mxu0 0
        %663 = vmatprep.subr.bf16.mxu0 0
        %664 = vmatpush1.bf16.msra.mxu0 0
        %665 = vmatprep.subr.bf16.mxu0 0
        %666 = vmatpush1.bf16.msra.mxu0 0
        %667 = vmatprep.mubr.bf16.mxu0 0
        %668 = vmatmul.mubr.bf16.gmra.mrb[0].mxu0 %v566
        %v669 = vpop.f32.mrb[0].mxu0
        %v670 = vadd.f32 %v545, %v669
        %v671 = vpop.f32.mrb[0].mxu0
        %v672 = vadd.f32 %v545, %v671
        %v673 = vpop.f32.mrb[0].mxu0
        %v674 = vadd.f32 %v550, %v673
        %v675 = vpop.f32.mrb[0].mxu0
        %v676 = vadd.f32 %v550, %v675
        %677 = vmatprep.mubr.bf16.mxu0 0
        %678 = vmatmul.mubr.bf16.gmra.mrb[0].mxu0 %v569
        %v679 = vpop.f32.mrb[0].mxu0
        %v680 = vadd.f32 %v555, %v679
        %v681 = vpop.f32.mrb[0].mxu0
        %v682 = vadd.f32 %v555, %v681
        %v683 = vpop.f32.mrb[0].mxu0
        %v684 = vpop.f32.mrb[0].mxu0
        %685 = vdwg.mxu0
        %v686 = vpack.c.bf16 %v619, %v619
        %v687 = vpack.c.bf16 %v621, %v621
        %v688 = vpack.c.bf16 %v670, %v670
        %v689 = vpack.c.bf16 %v672, %v672
        %v690 = vpack.c.bf16 %v629, %v623
        %v691 = vpack.c.bf16 %v631, %v625
        %v692 = vpack.c.bf16 %v680, %v674
        %v693 = vpack.c.bf16 %v682, %v676
        %s694 = sshra.s32 %s338, 7
        %s695 = sand.u32 %s338, 127
        %s696 = smul.addr %s694, 8
        %s697 = scalar_lea.vmem %s303, %s696 [#allocation2]
        %v698 = vld [vmem:[%s697] sm:$0xff]
        %v699 = vld [vmem:[%s697 + $0x8] sm:$0xff]
        %v700 = vmul.f32 %v698, %v517
        %v701 = vmul.f32 %v699, %v517
        %v702 = vadd.f32 %v700, %v526
        %v703 = vadd.f32 %v701, %v526
        %704 = vxpose.xlu0.b32.start [1/16] %v702, 128
        %705 = vxpose.xlu0.b32.cont [2/16] 0.0, 128
        %706 = vxpose.xlu0.b32.cont [3/16] 0.0, 128
        %707 = vxpose.xlu0.b32.cont [4/16] 0.0, 128
        %708 = vxpose.xlu0.b32.cont [5/16] 0.0, 128
        %709 = vxpose.xlu0.b32.cont [6/16] 0.0, 128
        %710 = vxpose.xlu0.b32.cont [7/16] 0.0, 128
        %711 = vxpose.xlu0.b32.cont [8/16] 0.0, 128
        %712 = vxpose.xlu0.b32.cont [9/16] 0.0, 128
        %713 = vxpose.xlu0.b32.cont [10/16] 0.0, 128
        %714 = vxpose.xlu0.b32.cont [11/16] 0.0, 128
        %715 = vxpose.xlu0.b32.cont [12/16] 0.0, 128
        %716 = vxpose.xlu0.b32.cont [13/16] 0.0, 128
        %717 = vxpose.xlu0.b32.cont [14/16] 0.0, 128
        %718 = vxpose.xlu0.b32.cont [15/16] 0.0, 128
        %719 = vxpose.xlu0.b32.end [16/16] 0.0, 128
        %v720 = vpop.trf.xlu0
        %v721 = vpop.trf.xlu0
        %v722 = vpop.trf.xlu0
        %v723 = vpop.trf.xlu0
        %v724 = vpop.trf.xlu0
        %v725 = vpop.trf.xlu0
        %v726 = vpop.trf.xlu0
        %v727 = vpop.trf.xlu0
        %v728 = vpop.trf.xlu0
        %v729 = vpop.trf.xlu0
        %v730 = vpop.trf.xlu0
        %v731 = vpop.trf.xlu0
        %v732 = vpop.trf.xlu0
        %v733 = vpop.trf.xlu0
        %v734 = vpop.trf.xlu0
        %v735 = vpop.trf.xlu0
        %736 = vxpose.xlu0.b32.start [1/16] %v703, 128
        %737 = vxpose.xlu0.b32.cont [2/16] 0.0, 128
        %738 = vxpose.xlu0.b32.cont [3/16] 0.0, 128
        %739 = vxpose.xlu0.b32.cont [4/16] 0.0, 128
        %740 = vxpose.xlu0.b32.cont [5/16] 0.0, 128
        %741 = vxpose.xlu0.b32.cont [6/16] 0.0, 128
        %742 = vxpose.xlu0.b32.cont [7/16] 0.0, 128
        %743 = vxpose.xlu0.b32.cont [8/16] 0.0, 128
        %744 = vxpose.xlu0.b32.cont [9/16] 0.0, 128
        %745 = vxpose.xlu0.b32.cont [10/16] 0.0, 128
        %746 = vxpose.xlu0.b32.cont [11/16] 0.0, 128
        %747 = vxpose.xlu0.b32.cont [12/16] 0.0, 128
        %748 = vxpose.xlu0.b32.cont [13/16] 0.0, 128
        %749 = vxpose.xlu0.b32.cont [14/16] 0.0, 128
        %750 = vxpose.xlu0.b32.cont [15/16] 0.0, 128
        %751 = vxpose.xlu0.b32.end [16/16] 0.0, 128
        %v752 = vpop.trf.xlu0
        %v753 = vpop.trf.xlu0
        %v754 = vpop.trf.xlu0
        %v755 = vpop.trf.xlu0
        %v756 = vpop.trf.xlu0
        %v757 = vpop.trf.xlu0
        %v758 = vpop.trf.xlu0
        %v759 = vpop.trf.xlu0
        %v760 = vpop.trf.xlu0
        %v761 = vpop.trf.xlu0
        %v762 = vpop.trf.xlu0
        %v763 = vpop.trf.xlu0
        %v764 = vpop.trf.xlu0
        %v765 = vpop.trf.xlu0
        %v766 = vpop.trf.xlu0
        %v767 = vpop.trf.xlu0
        %v768 = vpack.c.bf16 %v721, %v720
        %v769 = vpack.c.bf16 %v723, %v722
        %v770 = vpack.c.bf16 %v725, %v724
        %v771 = vpack.c.bf16 %v727, %v726
        %v772 = vpack.c.bf16 %v729, %v728
        %v773 = vpack.c.bf16 %v731, %v730
        %v774 = vpack.c.bf16 %v733, %v732
        %v775 = vpack.c.bf16 %v735, %v734
        %v776 = vpack.c.bf16 %v753, %v752
        %v777 = vpack.c.bf16 %v755, %v754
        %v778 = vpack.c.bf16 %v757, %v756
        %v779 = vpack.c.bf16 %v759, %v758
        %v780 = vpack.c.bf16 %v761, %v760
        %v781 = vpack.c.bf16 %v763, %v762
        %v782 = vpack.c.bf16 %v765, %v764
        %v783 = vpack.c.bf16 %v767, %v766
        %v784 = vld [vmem:[%s3] sm:$0xf]
        %v785 = vld [vmem:[%s4] sm:$0x1]
        %v787 = vlaneseq
        %v788 = vshrl.u32 %v787, 7
        %v789 = vsub.s32 0, %v788
        %v790 = vrot.slane %v785, %v789
        %v793 = vsel %vm358, %v768, 0
        %v796 = vsel %vm358, %v769, 0
        %v799 = vsel %vm358, %v770, 0
        %v802 = vsel %vm358, %v771, 0
        %v805 = vsel %vm358, %v772, 0
        %v808 = vsel %vm358, %v773, 0
        %v811 = vsel %vm358, %v774, 0
        %v814 = vsel %vm358, %v775, 0
        %v817 = vsel %vm358, %v776, 0
        %v820 = vsel %vm358, %v777, 0
        %v823 = vsel %vm358, %v778, 0
        %v826 = vsel %vm358, %v779, 0
        %v829 = vsel %vm358, %v780, 0
        %v832 = vsel %vm358, %v781, 0
        %v835 = vsel %vm358, %v782, 0
        %v838 = vsel %vm358, %v783, 0
        %v841 = vsel %vm571, %v784, 0
        %843 = vmatprep.subr.bf16.mxu0 0
        %844 = vmatpush1.bf16.msra.mxu0 %v841
        %845 = vmatprep.subr.bf16.mxu0 0
        %846 = vmatpush1.bf16.msra.mxu0 0
        %847 = vmatprep.subr.bf16.mxu0 0
        %848 = vmatpush1.bf16.msra.mxu0 0
        %849 = vmatprep.subr.bf16.mxu0 0
        %850 = vmatpush1.bf16.msra.mxu0 0
        %851 = vmatprep.subr.bf16.mxu0 0
        %852 = vmatpush1.bf16.msra.mxu0 0
        %853 = vmatprep.subr.bf16.mxu0 0
        %854 = vmatpush1.bf16.msra.mxu0 0
        %855 = vmatprep.subr.bf16.mxu0 0
        %856 = vmatpush1.bf16.msra.mxu0 0
        %857 = vmatprep.subr.bf16.mxu0 0
        %858 = vmatpush1.bf16.msra.mxu0 0
        %859 = vmatprep.subr.bf16.mxu0 0
        %860 = vmatpush1.bf16.msra.mxu0 0
        %861 = vmatprep.subr.bf16.mxu0 0
        %862 = vmatpush1.bf16.msra.mxu0 0
        %863 = vmatprep.subr.bf16.mxu0 0
        %864 = vmatpush1.bf16.msra.mxu0 0
        %865 = vmatprep.subr.bf16.mxu0 0
        %866 = vmatpush1.bf16.msra.mxu0 0
        %867 = vmatprep.subr.bf16.mxu0 0
        %868 = vmatpush1.bf16.msra.mxu0 0
        %869 = vmatprep.subr.bf16.mxu0 0
        %870 = vmatpush1.bf16.msra.mxu0 0
        %871 = vmatprep.subr.bf16.mxu0 0
        %872 = vmatpush1.bf16.msra.mxu0 0
        %873 = vmatprep.subr.bf16.mxu0 0
        %874 = vmatpush1.bf16.msra.mxu0 0
        %875 = vmatprep.mubr.bf16.mxu0 0
        %876 = vmatmul.mubr.bf16.gmra.mrb[0].mxu0 %v793
        %v877 = vpop.f32.mrb[0].mxu0
        %v878 = vadd.f32 %v790, %v877
        %v879 = vpop.f32.mrb[0].mxu0
        %v880 = vpop.f32.mrb[0].mxu0
        %v881 = vadd.f32 %v790, %v880
        %v882 = vpop.f32.mrb[0].mxu0
        %883 = vmatprep.mubr.bf16.mxu0 0
        %884 = vmatmul.mubr.bf16.gmra.mrb[0].mxu0 %v796
        %v885 = vpop.f32.mrb[0].mxu0
        %v886 = vadd.f32 %v790, %v885
        %v887 = vpop.f32.mrb[0].mxu0
        %v888 = vpop.f32.mrb[0].mxu0
        %v889 = vadd.f32 %v790, %v888
        %v890 = vpop.f32.mrb[0].mxu0
        %891 = vmatprep.mubr.bf16.mxu0 0
        %892 = vmatmul.mubr.bf16.gmra.mrb[0].mxu0 %v799
        %v893 = vpop.f32.mrb[0].mxu0
        %v894 = vadd.f32 %v790, %v893
        %v895 = vpop.f32.mrb[0].mxu0
        %v896 = vpop.f32.mrb[0].mxu0
        %v897 = vadd.f32 %v790, %v896
        %v898 = vpop.f32.mrb[0].mxu0
        %899 = vmatprep.mubr.bf16.mxu0 0
        %900 = vmatmul.mubr.bf16.gmra.mrb[0].mxu0 %v802
        %v901 = vpop.f32.mrb[0].mxu0
        %v902 = vadd.f32 %v790, %v901
        %v903 = vpop.f32.mrb[0].mxu0
        %v904 = vpop.f32.mrb[0].mxu0
        %v905 = vadd.f32 %v790, %v904
        %v906 = vpop.f32.mrb[0].mxu0
        %907 = vmatprep.mubr.bf16.mxu0 0
        %908 = vmatmul.mubr.bf16.gmra.mrb[0].mxu0 %v805
        %v909 = vpop.f32.mrb[0].mxu0
        %v910 = vadd.f32 %v790, %v909
        %v911 = vpop.f32.mrb[0].mxu0
        %v912 = vpop.f32.mrb[0].mxu0
        %v913 = vadd.f32 %v790, %v912
        %v914 = vpop.f32.mrb[0].mxu0
        %915 = vmatprep.mubr.bf16.mxu0 0
        %916 = vmatmul.mubr.bf16.gmra.mrb[0].mxu0 %v808
        %v917 = vpop.f32.mrb[0].mxu0
        %v918 = vadd.f32 %v790, %v917
        %v919 = vpop.f32.mrb[0].mxu0
        %v920 = vpop.f32.mrb[0].mxu0
        %v921 = vadd.f32 %v790, %v920
        %v922 = vpop.f32.mrb[0].mxu0
        %923 = vmatprep.mubr.bf16.mxu0 0
        %924 = vmatmul.mubr.bf16.gmra.mrb[0].mxu0 %v811
        %v925 = vpop.f32.mrb[0].mxu0
        %v926 = vadd.f32 %v790, %v925
        %v927 = vpop.f32.mrb[0].mxu0
        %v928 = vpop.f32.mrb[0].mxu0
        %v929 = vadd.f32 %v790, %v928
        %v930 = vpop.f32.mrb[0].mxu0
        %931 = vmatprep.mubr.bf16.mxu0 0
        %932 = vmatmul.mubr.bf16.gmra.mrb[0].mxu0 %v814
        %v933 = vpop.f32.mrb[0].mxu0
        %v934 = vadd.f32 %v790, %v933
        %v935 = vpop.f32.mrb[0].mxu0
        %v936 = vpop.f32.mrb[0].mxu0
        %v937 = vadd.f32 %v790, %v936
        %v938 = vpop.f32.mrb[0].mxu0
        %939 = vmatprep.mubr.bf16.mxu0 0
        %940 = vmatmul.mubr.bf16.gmra.mrb[0].mxu0 %v817
        %v941 = vpop.f32.mrb[0].mxu0
        %v942 = vadd.f32 %v790, %v941
        %v943 = vpop.f32.mrb[0].mxu0
        %v944 = vpop.f32.mrb[0].mxu0
        %v945 = vadd.f32 %v790, %v944
        %v946 = vpop.f32.mrb[0].mxu0
        %947 = vmatprep.mubr.bf16.mxu0 0
        %948 = vmatmul.mubr.bf16.gmra.mrb[0].mxu0 %v820
        %v949 = vpop.f32.mrb[0].mxu0
        %v950 = vadd.f32 %v790, %v949
        %v951 = vpop.f32.mrb[0].mxu0
        %v952 = vpop.f32.mrb[0].mxu0
        %v953 = vadd.f32 %v790, %v952
        %v954 = vpop.f32.mrb[0].mxu0
        %955 = vmatprep.mubr.bf16.mxu0 0
        %956 = vmatmul.mubr.bf16.gmra.mrb[0].mxu0 %v823
        %v957 = vpop.f32.mrb[0].mxu0
        %v958 = vadd.f32 %v790, %v957
        %v959 = vpop.f32.mrb[0].mxu0
        %v960 = vpop.f32.mrb[0].mxu0
        %v961 = vadd.f32 %v790, %v960
        %v962 = vpop.f32.mrb[0].mxu0
        %963 = vmatprep.mubr.bf16.mxu0 0
        %964 = vmatmul.mubr.bf16.gmra.mrb[0].mxu0 %v826
        %v965 = vpop.f32.mrb[0].mxu0
        %v966 = vadd.f32 %v790, %v965
        %v967 = vpop.f32.mrb[0].mxu0
        %v968 = vpop.f32.mrb[0].mxu0
        %v969 = vadd.f32 %v790, %v968
        %v970 = vpop.f32.mrb[0].mxu0
        %971 = vmatprep.mubr.bf16.mxu0 0
        %972 = vmatmul.mubr.bf16.gmra.mrb[0].mxu0 %v829
        %v973 = vpop.f32.mrb[0].mxu0
        %v974 = vadd.f32 %v790, %v973
        %v975 = vpop.f32.mrb[0].mxu0
        %v976 = vpop.f32.mrb[0].mxu0
        %v977 = vadd.f32 %v790, %v976
        %v978 = vpop.f32.mrb[0].mxu0
        %979 = vmatprep.mubr.bf16.mxu0 0
        %980 = vmatmul.mubr.bf16.gmra.mrb[0].mxu0 %v832
        %v981 = vpop.f32.mrb[0].mxu0
        %v982 = vadd.f32 %v790, %v981
        %v983 = vpop.f32.mrb[0].mxu0
        %v984 = vpop.f32.mrb[0].mxu0
        %v985 = vadd.f32 %v790, %v984
        %v986 = vpop.f32.mrb[0].mxu0
        %987 = vmatprep.mubr.bf16.mxu0 0
        %988 = vmatmul.mubr.bf16.gmra.mrb[0].mxu0 %v835
        %v989 = vpop.f32.mrb[0].mxu0
        %v990 = vadd.f32 %v790, %v989
        %v991 = vpop.f32.mrb[0].mxu0
        %v992 = vpop.f32.mrb[0].mxu0
        %v993 = vadd.f32 %v790, %v992
        %v994 = vpop.f32.mrb[0].mxu0
        %995 = vmatprep.mubr.bf16.mxu0 0
        %996 = vmatmul.mubr.bf16.gmra.mrb[0].mxu0 %v838
        %v997 = vpop.f32.mrb[0].mxu0
        %v998 = vadd.f32 %v790, %v997
        %v999 = vpop.f32.mrb[0].mxu0
        %v1000 = vpop.f32.mrb[0].mxu0
        %v1001 = vadd.f32 %v790, %v1000
        %v1002 = vpop.f32.mrb[0].mxu0
        %1003 = vdwg.mxu0
        %v1004 = vpack.c.bf16 %v881, %v878
        %v1005 = vpack.c.bf16 %v889, %v886
        %v1006 = vpack.c.bf16 %v897, %v894
        %v1007 = vpack.c.bf16 %v905, %v902
        %v1008 = vpack.c.bf16 %v913, %v910
        %v1009 = vpack.c.bf16 %v921, %v918
        %v1010 = vpack.c.bf16 %v929, %v926
        %v1011 = vpack.c.bf16 %v937, %v934
        %v1012 = vpack.c.bf16 %v945, %v942
        %v1013 = vpack.c.bf16 %v953, %v950
        %v1014 = vpack.c.bf16 %v961, %v958
        %v1015 = vpack.c.bf16 %v969, %v966
        %v1016 = vpack.c.bf16 %v977, %v974
        %v1017 = vpack.c.bf16 %v985, %v982
        %v1018 = vpack.c.bf16 %v993, %v990
        %v1019 = vpack.c.bf16 %v1001, %v998
        %v1021 = vsel %vm358, %v1004, 0
        %v1024 = vsel %vm358, %v1005, 0
        %v1027 = vsel %vm358, %v1006, 0
        %v1030 = vsel %vm358, %v1007, 0
        %v1033 = vsel %vm358, %v1008, 0
        %v1036 = vsel %vm358, %v1009, 0
        %v1039 = vsel %vm358, %v1010, 0
        %v1042 = vsel %vm358, %v1011, 0
        %v1045 = vsel %vm358, %v1012, 0
        %v1048 = vsel %vm358, %v1013, 0
        %v1051 = vsel %vm358, %v1014, 0
        %v1054 = vsel %vm358, %v1015, 0
        %v1057 = vsel %vm358, %v1016, 0
        %v1060 = vsel %vm358, %v1017, 0
        %v1063 = vsel %vm358, %v1018, 0
        %v1066 = vsel %vm358, %v1019, 0
        %v1069 = vsel %vm571, %v686, 0
        %v1072 = vsel %vm571, %v687, 0
        %v1075 = vsel %vm571, %v688, 0
        %v1078 = vsel %vm571, %v689, 0
        %1080 = vmatprep.subr.bf16.mxu0 %v1072
        %1081 = vmatpush1.bf16.msra.mxu0 %v1069
        %1082 = vmatprep.subr.bf16.mxu0 0
        %1083 = vmatpush1.bf16.msra.mxu0 0
        %1084 = vmatprep.subr.bf16.mxu0 0
        %1085 = vmatpush1.bf16.msra.mxu0 0
        %1086 = vmatprep.subr.bf16.mxu0 0
        %1087 = vmatpush1.bf16.msra.mxu0 0
        %1088 = vmatprep.subr.bf16.mxu0 0
        %1089 = vmatpush1.bf16.msra.mxu0 0
        %1090 = vmatprep.subr.bf16.mxu0 0
        %1091 = vmatpush1.bf16.msra.mxu0 0
        %1092 = vmatprep.subr.bf16.mxu0 0
        %1093 = vmatpush1.bf16.msra.mxu0 0
        %1094 = vmatprep.subr.bf16.mxu0 0
        %1095 = vmatpush1.bf16.msra.mxu0 0
        %1096 = vmatprep.subr.bf16.mxu0 0
        %1097 = vmatpush1.bf16.msra.mxu0 0
        %1098 = vmatprep.subr.bf16.mxu0 0
        %1099 = vmatpush1.bf16.msra.mxu0 0
        %1100 = vmatprep.subr.bf16.mxu0 0
        %1101 = vmatpush1.bf16.msra.mxu0 0
        %1102 = vmatprep.subr.bf16.mxu0 0
        %1103 = vmatpush1.bf16.msra.mxu0 0
        %1104 = vmatprep.subr.bf16.mxu0 0
        %1105 = vmatpush1.bf16.msra.mxu0 0
        %1106 = vmatprep.subr.bf16.mxu0 0
        %1107 = vmatpush1.bf16.msra.mxu0 0
        %1108 = vmatprep.subr.bf16.mxu0 0
        %1109 = vmatpush1.bf16.msra.mxu0 0
        %1110 = vmatprep.subr.bf16.mxu0 0
        %1111 = vmatpush1.bf16.msra.mxu0 0
        %1112 = vmatprep.mubr.bf16.mxu0 0
        %1113 = vmatmul.mubr.bf16.gmra.mrb[0].mxu0 %v1021
        %v1114 = vpop.f32.mrb[0].mxu0
        %v1115 = vadd.f32 0.0, %v1114
        %v1116 = vpop.f32.mrb[0].mxu0
        %v1117 = vadd.f32 0.0, %v1116
        %v1118 = vpop.f32.mrb[0].mxu0
        %v1119 = vadd.f32 0.0, %v1118
        %v1120 = vpop.f32.mrb[0].mxu0
        %v1121 = vadd.f32 0.0, %v1120
        %1122 = vmatprep.mubr.bf16.mxu0 0
        %1123 = vmatmul.mubr.bf16.gmra.mrb[0].mxu0 %v1024
        %v1124 = vpop.f32.mrb[0].mxu0
        %v1125 = vadd.f32 0.0, %v1124
        %v1126 = vpop.f32.mrb[0].mxu0
        %v1127 = vadd.f32 0.0, %v1126
        %v1128 = vpop.f32.mrb[0].mxu0
        %v1129 = vadd.f32 0.0, %v1128
        %v1130 = vpop.f32.mrb[0].mxu0
        %v1131 = vadd.f32 0.0, %v1130
        %1132 = vmatprep.mubr.bf16.mxu0 0
        %1133 = vmatmul.mubr.bf16.gmra.mrb[0].mxu0 %v1027
        %v1134 = vpop.f32.mrb[0].mxu0
        %v1135 = vadd.f32 0.0, %v1134
        %v1136 = vpop.f32.mrb[0].mxu0
        %v1137 = vadd.f32 0.0, %v1136
        %v1138 = vpop.f32.mrb[0].mxu0
        %v1139 = vadd.f32 0.0, %v1138
        %v1140 = vpop.f32.mrb[0].mxu0
        %v1141 = vadd.f32 0.0, %v1140
        %1142 = vmatprep.mubr.bf16.mxu0 0
        %1143 = vmatmul.mubr.bf16.gmra.mrb[0].mxu0 %v1030
        %v1144 = vpop.f32.mrb[0].mxu0
        %v1145 = vadd.f32 0.0, %v1144
        %v1146 = vpop.f32.mrb[0].mxu0
        %v1147 = vadd.f32 0.0, %v1146
        %v1148 = vpop.f32.mrb[0].mxu0
        %v1149 = vadd.f32 0.0, %v1148
        %v1150 = vpop.f32.mrb[0].mxu0
        %v1151 = vadd.f32 0.0, %v1150
        %1152 = vmatprep.mubr.bf16.mxu0 0
        %1153 = vmatmul.mubr.bf16.gmra.mrb[0].mxu0 %v1033
        %v1154 = vpop.f32.mrb[0].mxu0
        %v1155 = vadd.f32 0.0, %v1154
        %v1156 = vpop.f32.mrb[0].mxu0
        %v1157 = vadd.f32 0.0, %v1156
        %v1158 = vpop.f32.mrb[0].mxu0
        %v1159 = vadd.f32 0.0, %v1158
        %v1160 = vpop.f32.mrb[0].mxu0
        %v1161 = vadd.f32 0.0, %v1160
        %1162 = vmatprep.mubr.bf16.mxu0 0
        %1163 = vmatmul.mubr.bf16.gmra.mrb[0].mxu0 %v1036
        %v1164 = vpop.f32.mrb[0].mxu0
        %v1165 = vadd.f32 0.0, %v1164
        %v1166 = vpop.f32.mrb[0].mxu0
        %v1167 = vadd.f32 0.0, %v1166
        %v1168 = vpop.f32.mrb[0].mxu0
        %v1169 = vadd.f32 0.0, %v1168
        %v1170 = vpop.f32.mrb[0].mxu0
        %v1171 = vadd.f32 0.0, %v1170
        %1172 = vmatprep.mubr.bf16.mxu0 0
        %1173 = vmatmul.mubr.bf16.gmra.mrb[0].mxu0 %v1039
        %v1174 = vpop.f32.mrb[0].mxu0
        %v1175 = vadd.f32 0.0, %v1174
        %v1176 = vpop.f32.mrb[0].mxu0
        %v1177 = vadd.f32 0.0, %v1176
        %v1178 = vpop.f32.mrb[0].mxu0
        %v1179 = vadd.f32 0.0, %v1178
        %v1180 = vpop.f32.mrb[0].mxu0
        %v1181 = vadd.f32 0.0, %v1180
        %1182 = vmatprep.mubr.bf16.mxu0 0
        %1183 = vmatmul.mubr.bf16.gmra.mrb[0].mxu0 %v1042
        %v1184 = vpop.f32.mrb[0].mxu0
        %v1185 = vadd.f32 0.0, %v1184
        %v1186 = vpop.f32.mrb[0].mxu0
        %v1187 = vadd.f32 0.0, %v1186
        %v1188 = vpop.f32.mrb[0].mxu0
        %v1189 = vadd.f32 0.0, %v1188
        %v1190 = vpop.f32.mrb[0].mxu0
        %v1191 = vadd.f32 0.0, %v1190
        %1192 = vmatprep.mubr.bf16.mxu0 0
        %1193 = vmatmul.mubr.bf16.gmra.mrb[0].mxu0 %v1045
        %v1194 = vpop.f32.mrb[0].mxu0
        %v1195 = vadd.f32 0.0, %v1194
        %v1196 = vpop.f32.mrb[0].mxu0
        %v1197 = vadd.f32 0.0, %v1196
        %v1198 = vpop.f32.mrb[0].mxu0
        %v1199 = vadd.f32 0.0, %v1198
        %v1200 = vpop.f32.mrb[0].mxu0
        %v1201 = vadd.f32 0.0, %v1200
        %1202 = vmatprep.mubr.bf16.mxu0 0
        %1203 = vmatmul.mubr.bf16.gmra.mrb[0].mxu0 %v1048
        %v1204 = vpop.f32.mrb[0].mxu0
        %v1205 = vadd.f32 0.0, %v1204
        %v1206 = vpop.f32.mrb[0].mxu0
        %v1207 = vadd.f32 0.0, %v1206
        %v1208 = vpop.f32.mrb[0].mxu0
        %v1209 = vadd.f32 0.0, %v1208
        %v1210 = vpop.f32.mrb[0].mxu0
        %v1211 = vadd.f32 0.0, %v1210
        %1212 = vmatprep.mubr.bf16.mxu0 0
        %1213 = vmatmul.mubr.bf16.gmra.mrb[0].mxu0 %v1051
        %v1214 = vpop.f32.mrb[0].mxu0
        %v1215 = vadd.f32 0.0, %v1214
        %v1216 = vpop.f32.mrb[0].mxu0
        %v1217 = vadd.f32 0.0, %v1216
        %v1218 = vpop.f32.mrb[0].mxu0
        %v1219 = vadd.f32 0.0, %v1218
        %v1220 = vpop.f32.mrb[0].mxu0
        %v1221 = vadd.f32 0.0, %v1220
        %1222 = vmatprep.mubr.bf16.mxu0 0
        %1223 = vmatmul.mubr.bf16.gmra.mrb[0].mxu0 %v1054
        %v1224 = vpop.f32.mrb[0].mxu0
        %v1225 = vadd.f32 0.0, %v1224
        %v1226 = vpop.f32.mrb[0].mxu0
        %v1227 = vadd.f32 0.0, %v1226
        %v1228 = vpop.f32.mrb[0].mxu0
        %v1229 = vadd.f32 0.0, %v1228
        %v1230 = vpop.f32.mrb[0].mxu0
        %v1231 = vadd.f32 0.0, %v1230
        %1232 = vmatprep.mubr.bf16.mxu0 0
        %1233 = vmatmul.mubr.bf16.gmra.mrb[0].mxu0 %v1057
        %v1234 = vpop.f32.mrb[0].mxu0
        %v1235 = vadd.f32 0.0, %v1234
        %v1236 = vpop.f32.mrb[0].mxu0
        %v1237 = vadd.f32 0.0, %v1236
        %v1238 = vpop.f32.mrb[0].mxu0
        %v1239 = vadd.f32 0.0, %v1238
        %v1240 = vpop.f32.mrb[0].mxu0
        %v1241 = vadd.f32 0.0, %v1240
        %1242 = vmatprep.mubr.bf16.mxu0 0
        %1243 = vmatmul.mubr.bf16.gmra.mrb[0].mxu0 %v1060
        %v1244 = vpop.f32.mrb[0].mxu0
        %v1245 = vadd.f32 0.0, %v1244
        %v1246 = vpop.f32.mrb[0].mxu0
        %v1247 = vadd.f32 0.0, %v1246
        %v1248 = vpop.f32.mrb[0].mxu0
        %v1249 = vadd.f32 0.0, %v1248
        %v1250 = vpop.f32.mrb[0].mxu0
        %v1251 = vadd.f32 0.0, %v1250
        %1252 = vmatprep.mubr.bf16.mxu0 0
        %1253 = vmatmul.mubr.bf16.gmra.mrb[0].mxu0 %v1063
        %v1254 = vpop.f32.mrb[0].mxu0
        %v1255 = vadd.f32 0.0, %v1254
        %v1256 = vpop.f32.mrb[0].mxu0
        %v1257 = vadd.f32 0.0, %v1256
        %v1258 = vpop.f32.mrb[0].mxu0
        %v1259 = vadd.f32 0.0, %v1258
        %v1260 = vpop.f32.mrb[0].mxu0
        %v1261 = vadd.f32 0.0, %v1260
        %1262 = vmatprep.mubr.bf16.mxu0 0
        %1263 = vmatmul.mubr.bf16.gmra.mrb[0].mxu0 %v1066
        %v1264 = vpop.f32.mrb[0].mxu0
        %v1265 = vadd.f32 0.0, %v1264
        %v1266 = vpop.f32.mrb[0].mxu0
        %v1267 = vadd.f32 0.0, %v1266
        %v1268 = vpop.f32.mrb[0].mxu0
        %v1269 = vadd.f32 0.0, %v1268
        %v1270 = vpop.f32.mrb[0].mxu0
        %v1271 = vadd.f32 0.0, %v1270
        %1272 = vdwg.mxu0
        %1273 = vmatprep.subr.bf16.mxu0 %v1078
        %1274 = vmatpush1.bf16.msra.mxu0 %v1075
        %1275 = vmatprep.subr.bf16.mxu0 0
        %1276 = vmatpush1.bf16.msra.mxu0 0
        %1277 = vmatprep.subr.bf16.mxu0 0
        %1278 = vmatpush1.bf16.msra.mxu0 0
        %1279 = vmatprep.subr.bf16.mxu0 0
        %1280 = vmatpush1.bf16.msra.mxu0 0
        %1281 = vmatprep.subr.bf16.mxu0 0
        %1282 = vmatpush1.bf16.msra.mxu0 0
        %1283 = vmatprep.subr.bf16.mxu0 0
        %1284 = vmatpush1.bf16.msra.mxu0 0
        %1285 = vmatprep.subr.bf16.mxu0 0
        %1286 = vmatpush1.bf16.msra.mxu0 0
        %1287 = vmatprep.subr.bf16.mxu0 0
        %1288 = vmatpush1.bf16.msra.mxu0 0
        %1289 = vmatprep.subr.bf16.mxu0 0
        %1290 = vmatpush1.bf16.msra.mxu0 0
        %1291 = vmatprep.subr.bf16.mxu0 0
        %1292 = vmatpush1.bf16.msra.mxu0 0
        %1293 = vmatprep.subr.bf16.mxu0 0
        %1294 = vmatpush1.bf16.msra.mxu0 0
        %1295 = vmatprep.subr.bf16.mxu0 0
        %1296 = vmatpush1.bf16.msra.mxu0 0
        %1297 = vmatprep.subr.bf16.mxu0 0
        %1298 = vmatpush1.bf16.msra.mxu0 0
        %1299 = vmatprep.subr.bf16.mxu0 0
        %1300 = vmatpush1.bf16.msra.mxu0 0
        %1301 = vmatprep.subr.bf16.mxu0 0
        %1302 = vmatpush1.bf16.msra.mxu0 0
        %1303 = vmatprep.subr.bf16.mxu0 0
        %1304 = vmatpush1.bf16.msra.mxu0 0
        %1305 = vmatprep.mubr.bf16.mxu0 0
        %1306 = vmatmul.mubr.bf16.gmra.mrb[0].mxu0 %v1021
        %v1307 = vpop.f32.mrb[0].mxu0
        %v1308 = vadd.f32 0.0, %v1307
        %v1309 = vpop.f32.mrb[0].mxu0
        %v1310 = vadd.f32 0.0, %v1309
        %v1311 = vpop.f32.mrb[0].mxu0
        %v1312 = vadd.f32 0.0, %v1311
        %v1313 = vpop.f32.mrb[0].mxu0
        %v1314 = vadd.f32 0.0, %v1313
        %1315 = vmatprep.mubr.bf16.mxu0 0
        %1316 = vmatmul.mubr.bf16.gmra.mrb[0].mxu0 %v1024
        %v1317 = vpop.f32.mrb[0].mxu0
        %v1318 = vadd.f32 0.0, %v1317
        %v1319 = vpop.f32.mrb[0].mxu0
        %v1320 = vadd.f32 0.0, %v1319
        %v1321 = vpop.f32.mrb[0].mxu0
        %v1322 = vadd.f32 0.0, %v1321
        %v1323 = vpop.f32.mrb[0].mxu0
        %v1324 = vadd.f32 0.0, %v1323
        %1325 = vmatprep.mubr.bf16.mxu0 0
        %1326 = vmatmul.mubr.bf16.gmra.mrb[0].mxu0 %v1027
        %v1327 = vpop.f32.mrb[0].mxu0
        %v1328 = vadd.f32 0.0, %v1327
        %v1329 = vpop.f32.mrb[0].mxu0
        %v1330 = vadd.f32 0.0, %v1329
        %v1331 = vpop.f32.mrb[0].mxu0
        %v1332 = vadd.f32 0.0, %v1331
        %v1333 = vpop.f32.mrb[0].mxu0
        %v1334 = vadd.f32 0.0, %v1333
        %1335 = vmatprep.mubr.bf16.mxu0 0
        %1336 = vmatmul.mubr.bf16.gmra.mrb[0].mxu0 %v1030
        %v1337 = vpop.f32.mrb[0].mxu0
        %v1338 = vadd.f32 0.0, %v1337
        %v1339 = vpop.f32.mrb[0].mxu0
        %v1340 = vadd.f32 0.0, %v1339
        %v1341 = vpop.f32.mrb[0].mxu0
        %v1342 = vadd.f32 0.0, %v1341
        %v1343 = vpop.f32.mrb[0].mxu0
        %v1344 = vadd.f32 0.0, %v1343
        %1345 = vmatprep.mubr.bf16.mxu0 0
        %1346 = vmatmul.mubr.bf16.gmra.mrb[0].mxu0 %v1033
        %v1347 = vpop.f32.mrb[0].mxu0
        %v1348 = vadd.f32 0.0, %v1347
        %v1349 = vpop.f32.mrb[0].mxu0
        %v1350 = vadd.f32 0.0, %v1349
        %v1351 = vpop.f32.mrb[0].mxu0
        %v1352 = vadd.f32 0.0, %v1351
        %v1353 = vpop.f32.mrb[0].mxu0
        %v1354 = vadd.f32 0.0, %v1353
        %1355 = vmatprep.mubr.bf16.mxu0 0
        %1356 = vmatmul.mubr.bf16.gmra.mrb[0].mxu0 %v1036
        %v1357 = vpop.f32.mrb[0].mxu0
        %v1358 = vadd.f32 0.0, %v1357
        %v1359 = vpop.f32.mrb[0].mxu0
        %v1360 = vadd.f32 0.0, %v1359
        %v1361 = vpop.f32.mrb[0].mxu0
        %v1362 = vadd.f32 0.0, %v1361
        %v1363 = vpop.f32.mrb[0].mxu0
        %v1364 = vadd.f32 0.0, %v1363
        %1365 = vmatprep.mubr.bf16.mxu0 0
        %1366 = vmatmul.mubr.bf16.gmra.mrb[0].mxu0 %v1039
        %v1367 = vpop.f32.mrb[0].mxu0
        %v1368 = vadd.f32 0.0, %v1367
        %v1369 = vpop.f32.mrb[0].mxu0
        %v1370 = vadd.f32 0.0, %v1369
        %v1371 = vpop.f32.mrb[0].mxu0
        %v1372 = vadd.f32 0.0, %v1371
        %v1373 = vpop.f32.mrb[0].mxu0
        %v1374 = vadd.f32 0.0, %v1373
        %1375 = vmatprep.mubr.bf16.mxu0 0
        %1376 = vmatmul.mubr.bf16.gmra.mrb[0].mxu0 %v1042
        %v1377 = vpop.f32.mrb[0].mxu0
        %v1378 = vadd.f32 0.0, %v1377
        %v1379 = vpop.f32.mrb[0].mxu0
        %v1380 = vadd.f32 0.0, %v1379
        %v1381 = vpop.f32.mrb[0].mxu0
        %v1382 = vadd.f32 0.0, %v1381
        %v1383 = vpop.f32.mrb[0].mxu0
        %v1384 = vadd.f32 0.0, %v1383
        %1385 = vmatprep.mubr.bf16.mxu0 0
        %1386 = vmatmul.mubr.bf16.gmra.mrb[0].mxu0 %v1045
        %v1387 = vpop.f32.mrb[0].mxu0
        %v1388 = vadd.f32 0.0, %v1387
        %v1389 = vpop.f32.mrb[0].mxu0
        %v1390 = vadd.f32 0.0, %v1389
        %v1391 = vpop.f32.mrb[0].mxu0
        %v1392 = vadd.f32 0.0, %v1391
        %v1393 = vpop.f32.mrb[0].mxu0
        %v1394 = vadd.f32 0.0, %v1393
        %1395 = vmatprep.mubr.bf16.mxu0 0
        %1396 = vmatmul.mubr.bf16.gmra.mrb[0].mxu0 %v1048
        %v1397 = vpop.f32.mrb[0].mxu0
        %v1398 = vadd.f32 0.0, %v1397
        %v1399 = vpop.f32.mrb[0].mxu0
        %v1400 = vadd.f32 0.0, %v1399
        %v1401 = vpop.f32.mrb[0].mxu0
        %v1402 = vadd.f32 0.0, %v1401
        %v1403 = vpop.f32.mrb[0].mxu0
        %v1404 = vadd.f32 0.0, %v1403
        %1405 = vmatprep.mubr.bf16.mxu0 0
        %1406 = vmatmul.mubr.bf16.gmra.mrb[0].mxu0 %v1051
        %v1407 = vpop.f32.mrb[0].mxu0
        %v1408 = vadd.f32 0.0, %v1407
        %v1409 = vpop.f32.mrb[0].mxu0
        %v1410 = vadd.f32 0.0, %v1409
        %v1411 = vpop.f32.mrb[0].mxu0
        %v1412 = vadd.f32 0.0, %v1411
        %v1413 = vpop.f32.mrb[0].mxu0
        %v1414 = vadd.f32 0.0, %v1413
        %1415 = vmatprep.mubr.bf16.mxu0 0
        %1416 = vmatmul.mubr.bf16.gmra.mrb[0].mxu0 %v1054
        %v1417 = vpop.f32.mrb[0].mxu0
        %v1418 = vadd.f32 0.0, %v1417
        %v1419 = vpop.f32.mrb[0].mxu0
        %v1420 = vadd.f32 0.0, %v1419
        %v1421 = vpop.f32.mrb[0].mxu0
        %v1422 = vadd.f32 0.0, %v1421
        %v1423 = vpop.f32.mrb[0].mxu0
        %v1424 = vadd.f32 0.0, %v1423
        %1425 = vmatprep.mubr.bf16.mxu0 0
        %1426 = vmatmul.mubr.bf16.gmra.mrb[0].mxu0 %v1057
        %v1427 = vpop.f32.mrb[0].mxu0
        %v1428 = vadd.f32 0.0, %v1427
        %v1429 = vpop.f32.mrb[0].mxu0
        %v1430 = vadd.f32 0.0, %v1429
        %v1431 = vpop.f32.mrb[0].mxu0
        %v1432 = vadd.f32 0.0, %v1431
        %v1433 = vpop.f32.mrb[0].mxu0
        %v1434 = vadd.f32 0.0, %v1433
        %1435 = vmatprep.mubr.bf16.mxu0 0
        %1436 = vmatmul.mubr.bf16.gmra.mrb[0].mxu0 %v1060
        %v1437 = vpop.f32.mrb[0].mxu0
        %v1438 = vadd.f32 0.0, %v1437
        %v1439 = vpop.f32.mrb[0].mxu0
        %v1440 = vadd.f32 0.0, %v1439
        %v1441 = vpop.f32.mrb[0].mxu0
        %v1442 = vadd.f32 0.0, %v1441
        %v1443 = vpop.f32.mrb[0].mxu0
        %v1444 = vadd.f32 0.0, %v1443
        %1445 = vmatprep.mubr.bf16.mxu0 0
        %1446 = vmatmul.mubr.bf16.gmra.mrb[0].mxu0 %v1063
        %v1447 = vpop.f32.mrb[0].mxu0
        %v1448 = vadd.f32 0.0, %v1447
        %v1449 = vpop.f32.mrb[0].mxu0
        %v1450 = vadd.f32 0.0, %v1449
        %v1451 = vpop.f32.mrb[0].mxu0
        %v1452 = vadd.f32 0.0, %v1451
        %v1453 = vpop.f32.mrb[0].mxu0
        %v1454 = vadd.f32 0.0, %v1453
        %1455 = vmatprep.mubr.bf16.mxu0 0
        %1456 = vmatmul.mubr.bf16.gmra.mrb[0].mxu0 %v1066
        %v1457 = vpop.f32.mrb[0].mxu0
        %v1458 = vadd.f32 0.0, %v1457
        %v1459 = vpop.f32.mrb[0].mxu0
        %v1460 = vadd.f32 0.0, %v1459
        %v1461 = vpop.f32.mrb[0].mxu0
        %v1462 = vadd.f32 0.0, %v1461
        %v1463 = vpop.f32.mrb[0].mxu0
        %v1464 = vadd.f32 0.0, %v1463
        %1465 = vdwg.mxu0
        %v1466 = vmax.f32 %v1115, %v1117
        %v1467 = vmax.f32 %v1466, %v1308
        %v1468 = vmax.f32 %v1467, %v1310
        %1469 = vmax.xlane.f32.xlu0 %v1468
        %v1470 = vpop.xlane.xlu0 %1469
        %v1471 = vmax.f32 %v1119, %v1121
        %v1472 = vmax.f32 %v1471, %v1312
        %v1473 = vmax.f32 %v1472, %v1314
        %1474 = vmax.xlane.f32.xlu0 %v1473
        %v1475 = vpop.xlane.xlu0 %1474
        %v1476 = vmax.f32 %v1125, %v1127
        %v1477 = vmax.f32 %v1476, %v1318
        %v1478 = vmax.f32 %v1477, %v1320
        %1479 = vmax.xlane.f32.xlu0 %v1478
        %v1480 = vpop.xlane.xlu0 %1479
        %v1481 = vmax.f32 %v1129, %v1131
        %v1482 = vmax.f32 %v1481, %v1322
        %v1483 = vmax.f32 %v1482, %v1324
        %1484 = vmax.xlane.f32.xlu0 %v1483
        %v1485 = vpop.xlane.xlu0 %1484
        %v1486 = vmax.f32 %v1135, %v1137
        %v1487 = vmax.f32 %v1486, %v1328
        %v1488 = vmax.f32 %v1487, %v1330
        %1489 = vmax.xlane.f32.xlu0 %v1488
        %v1490 = vpop.xlane.xlu0 %1489
        %v1491 = vmax.f32 %v1139, %v1141
        %v1492 = vmax.f32 %v1491, %v1332
        %v1493 = vmax.f32 %v1492, %v1334
        %1494 = vmax.xlane.f32.xlu0 %v1493
        %v1495 = vpop.xlane.xlu0 %1494
        %v1496 = vmax.f32 %v1145, %v1147
        %v1497 = vmax.f32 %v1496, %v1338
        %v1498 = vmax.f32 %v1497, %v1340
        %1499 = vmax.xlane.f32.xlu0 %v1498
        %v1500 = vpop.xlane.xlu0 %1499
        %v1501 = vmax.f32 %v1149, %v1151
        %v1502 = vmax.f32 %v1501, %v1342
        %v1503 = vmax.f32 %v1502, %v1344
        %1504 = vmax.xlane.f32.xlu0 %v1503
        %v1505 = vpop.xlane.xlu0 %1504
        %v1506 = vmax.f32 %v1155, %v1157
        %v1507 = vmax.f32 %v1506, %v1348
        %v1508 = vmax.f32 %v1507, %v1350
        %1509 = vmax.xlane.f32.xlu0 %v1508
        %v1510 = vpop.xlane.xlu0 %1509
        %v1511 = vmax.f32 %v1159, %v1161
        %v1512 = vmax.f32 %v1511, %v1352
        %v1513 = vmax.f32 %v1512, %v1354
        %1514 = vmax.xlane.f32.xlu0 %v1513
        %v1515 = vpop.xlane.xlu0 %1514
        %v1516 = vmax.f32 %v1165, %v1167
        %v1517 = vmax.f32 %v1516, %v1358
        %v1518 = vmax.f32 %v1517, %v1360
        %1519 = vmax.xlane.f32.xlu0 %v1518
        %v1520 = vpop.xlane.xlu0 %1519
        %v1521 = vmax.f32 %v1169, %v1171
        %v1522 = vmax.f32 %v1521, %v1362
        %v1523 = vmax.f32 %v1522, %v1364
        %1524 = vmax.xlane.f32.xlu0 %v1523
        %v1525 = vpop.xlane.xlu0 %1524
        %v1526 = vmax.f32 %v1175, %v1177
        %v1527 = vmax.f32 %v1526, %v1368
        %v1528 = vmax.f32 %v1527, %v1370
        %1529 = vmax.xlane.f32.xlu0 %v1528
        %v1530 = vpop.xlane.xlu0 %1529
        %v1531 = vmax.f32 %v1179, %v1181
        %v1532 = vmax.f32 %v1531, %v1372
        %v1533 = vmax.f32 %v1532, %v1374
        %1534 = vmax.xlane.f32.xlu0 %v1533
        %v1535 = vpop.xlane.xlu0 %1534
        %v1536 = vmax.f32 %v1185, %v1187
        %v1537 = vmax.f32 %v1536, %v1378
        %v1538 = vmax.f32 %v1537, %v1380
        %1539 = vmax.xlane.f32.xlu0 %v1538
        %v1540 = vpop.xlane.xlu0 %1539
        %v1541 = vmax.f32 %v1189, %v1191
        %v1542 = vmax.f32 %v1541, %v1382
        %v1543 = vmax.f32 %v1542, %v1384
        %1544 = vmax.xlane.f32.xlu0 %v1543
        %v1545 = vpop.xlane.xlu0 %1544
        %v1546 = vmax.f32 %v1195, %v1197
        %v1547 = vmax.f32 %v1546, %v1388
        %v1548 = vmax.f32 %v1547, %v1390
        %1549 = vmax.xlane.f32.xlu0 %v1548
        %v1550 = vpop.xlane.xlu0 %1549
        %v1551 = vmax.f32 %v1199, %v1201
        %v1552 = vmax.f32 %v1551, %v1392
        %v1553 = vmax.f32 %v1552, %v1394
        %1554 = vmax.xlane.f32.xlu0 %v1553
        %v1555 = vpop.xlane.xlu0 %1554
        %v1556 = vmax.f32 %v1205, %v1207
        %v1557 = vmax.f32 %v1556, %v1398
        %v1558 = vmax.f32 %v1557, %v1400
        %1559 = vmax.xlane.f32.xlu0 %v1558
        %v1560 = vpop.xlane.xlu0 %1559
        %v1561 = vmax.f32 %v1209, %v1211
        %v1562 = vmax.f32 %v1561, %v1402
        %v1563 = vmax.f32 %v1562, %v1404
        %1564 = vmax.xlane.f32.xlu0 %v1563
        %v1565 = vpop.xlane.xlu0 %1564
        %v1566 = vmax.f32 %v1215, %v1217
        %v1567 = vmax.f32 %v1566, %v1408
        %v1568 = vmax.f32 %v1567, %v1410
        %1569 = vmax.xlane.f32.xlu0 %v1568
        %v1570 = vpop.xlane.xlu0 %1569
        %v1571 = vmax.f32 %v1219, %v1221
        %v1572 = vmax.f32 %v1571, %v1412
        %v1573 = vmax.f32 %v1572, %v1414
        %1574 = vmax.xlane.f32.xlu0 %v1573
        %v1575 = vpop.xlane.xlu0 %1574
        %v1576 = vmax.f32 %v1225, %v1227
        %v1577 = vmax.f32 %v1576, %v1418
        %v1578 = vmax.f32 %v1577, %v1420
        %1579 = vmax.xlane.f32.xlu0 %v1578
        %v1580 = vpop.xlane.xlu0 %1579
        %v1581 = vmax.f32 %v1229, %v1231
        %v1582 = vmax.f32 %v1581, %v1422
        %v1583 = vmax.f32 %v1582, %v1424
        %1584 = vmax.xlane.f32.xlu0 %v1583
        %v1585 = vpop.xlane.xlu0 %1584
        %v1586 = vmax.f32 %v1235, %v1237
        %v1587 = vmax.f32 %v1586, %v1428
        %v1588 = vmax.f32 %v1587, %v1430
        %1589 = vmax.xlane.f32.xlu0 %v1588
        %v1590 = vpop.xlane.xlu0 %1589
        %v1591 = vmax.f32 %v1239, %v1241
        %v1592 = vmax.f32 %v1591, %v1432
        %v1593 = vmax.f32 %v1592, %v1434
        %1594 = vmax.xlane.f32.xlu0 %v1593
        %v1595 = vpop.xlane.xlu0 %1594
        %v1596 = vmax.f32 %v1245, %v1247
        %v1597 = vmax.f32 %v1596, %v1438
        %v1598 = vmax.f32 %v1597, %v1440
        %1599 = vmax.xlane.f32.xlu0 %v1598
        %v1600 = vpop.xlane.xlu0 %1599
        %v1601 = vmax.f32 %v1249, %v1251
        %v1602 = vmax.f32 %v1601, %v1442
        %v1603 = vmax.f32 %v1602, %v1444
        %1604 = vmax.xlane.f32.xlu0 %v1603
        %v1605 = vpop.xlane.xlu0 %1604
        %v1606 = vmax.f32 %v1255, %v1257
        %v1607 = vmax.f32 %v1606, %v1448
        %v1608 = vmax.f32 %v1607, %v1450
        %1609 = vmax.xlane.f32.xlu0 %v1608
        %v1610 = vpop.xlane.xlu0 %1609
        %v1611 = vmax.f32 %v1259, %v1261
        %v1612 = vmax.f32 %v1611, %v1452
        %v1613 = vmax.f32 %v1612, %v1454
        %1614 = vmax.xlane.f32.xlu0 %v1613
        %v1615 = vpop.xlane.xlu0 %1614
        %v1616 = vmax.f32 %v1265, %v1267
        %v1617 = vmax.f32 %v1616, %v1458
        %v1618 = vmax.f32 %v1617, %v1460
        %1619 = vmax.xlane.f32.xlu0 %v1618
        %v1620 = vpop.xlane.xlu0 %1619
        %v1621 = vmax.f32 %v1269, %v1271
        %v1622 = vmax.f32 %v1621, %v1462
        %v1623 = vmax.f32 %v1622, %v1464
        %1624 = vmax.xlane.f32.xlu0 %v1623
        %v1625 = vpop.xlane.xlu0 %1624
        %v1626 = vsub.f32 %v1115, %v1470
        %v1627 = vsub.f32 %v1117, %v1470
        %v1628 = vsub.f32 %v1308, %v1470
        %v1629 = vsub.f32 %v1310, %v1470
        %v1630 = vsub.f32 %v1119, %v1475
        %v1631 = vsub.f32 %v1121, %v1475
        %v1632 = vsub.f32 %v1312, %v1475
        %v1633 = vsub.f32 %v1314, %v1475
        %v1634 = vsub.f32 %v1125, %v1480
        %v1635 = vsub.f32 %v1127, %v1480
        %v1636 = vsub.f32 %v1318, %v1480
        %v1637 = vsub.f32 %v1320, %v1480
        %v1638 = vsub.f32 %v1129, %v1485
        %v1639 = vsub.f32 %v1131, %v1485
        %v1640 = vsub.f32 %v1322, %v1485
        %v1641 = vsub.f32 %v1324, %v1485
        %v1642 = vsub.f32 %v1135, %v1490
        %v1643 = vsub.f32 %v1137, %v1490
        %v1644 = vsub.f32 %v1328, %v1490
        %v1645 = vsub.f32 %v1330, %v1490
        %v1646 = vsub.f32 %v1139, %v1495
        %v1647 = vsub.f32 %v1141, %v1495
        %v1648 = vsub.f32 %v1332, %v1495
        %v1649 = vsub.f32 %v1334, %v1495
        %v1650 = vsub.f32 %v1145, %v1500
        %v1651 = vsub.f32 %v1147, %v1500
        %v1652 = vsub.f32 %v1338, %v1500
        %v1653 = vsub.f32 %v1340, %v1500
        %v1654 = vsub.f32 %v1149, %v1505
        %v1655 = vsub.f32 %v1151, %v1505
        %v1656 = vsub.f32 %v1342, %v1505
        %v1657 = vsub.f32 %v1344, %v1505
        %v1658 = vsub.f32 %v1155, %v1510
        %v1659 = vsub.f32 %v1157, %v1510
        %v1660 = vsub.f32 %v1348, %v1510
        %v1661 = vsub.f32 %v1350, %v1510
        %v1662 = vsub.f32 %v1159, %v1515
        %v1663 = vsub.f32 %v1161, %v1515
        %v1664 = vsub.f32 %v1352, %v1515
        %v1665 = vsub.f32 %v1354, %v1515
        %v1666 = vsub.f32 %v1165, %v1520
        %v1667 = vsub.f32 %v1167, %v1520
        %v1668 = vsub.f32 %v1358, %v1520
        %v1669 = vsub.f32 %v1360, %v1520
        %v1670 = vsub.f32 %v1169, %v1525
        %v1671 = vsub.f32 %v1171, %v1525
        %v1672 = vsub.f32 %v1362, %v1525
        %v1673 = vsub.f32 %v1364, %v1525
        %v1674 = vsub.f32 %v1175, %v1530
        %v1675 = vsub.f32 %v1177, %v1530
        %v1676 = vsub.f32 %v1368, %v1530
        %v1677 = vsub.f32 %v1370, %v1530
        %v1678 = vsub.f32 %v1179, %v1535
        %v1679 = vsub.f32 %v1181, %v1535
        %v1680 = vsub.f32 %v1372, %v1535
        %v1681 = vsub.f32 %v1374, %v1535
        %v1682 = vsub.f32 %v1185, %v1540
        %v1683 = vsub.f32 %v1187, %v1540
        %v1684 = vsub.f32 %v1378, %v1540
        %v1685 = vsub.f32 %v1380, %v1540
        %v1686 = vsub.f32 %v1189, %v1545
        %v1687 = vsub.f32 %v1191, %v1545
        %v1688 = vsub.f32 %v1382, %v1545
        %v1689 = vsub.f32 %v1384, %v1545
        %v1690 = vsub.f32 %v1195, %v1550
        %v1691 = vsub.f32 %v1197, %v1550
        %v1692 = vsub.f32 %v1388, %v1550
        %v1693 = vsub.f32 %v1390, %v1550
        %v1694 = vsub.f32 %v1199, %v1555
        %v1695 = vsub.f32 %v1201, %v1555
        %v1696 = vsub.f32 %v1392, %v1555
        %v1697 = vsub.f32 %v1394, %v1555
        %v1698 = vsub.f32 %v1205, %v1560
        %v1699 = vsub.f32 %v1207, %v1560
        %v1700 = vsub.f32 %v1398, %v1560
        %v1701 = vsub.f32 %v1400, %v1560
        %v1702 = vsub.f32 %v1209, %v1565
        %v1703 = vsub.f32 %v1211, %v1565
        %v1704 = vsub.f32 %v1402, %v1565
        %v1705 = vsub.f32 %v1404, %v1565
        %v1706 = vsub.f32 %v1215, %v1570
        %v1707 = vsub.f32 %v1217, %v1570
        %v1708 = vsub.f32 %v1408, %v1570
        %v1709 = vsub.f32 %v1410, %v1570
        %v1710 = vsub.f32 %v1219, %v1575
        %v1711 = vsub.f32 %v1221, %v1575
        %v1712 = vsub.f32 %v1412, %v1575
        %v1713 = vsub.f32 %v1414, %v1575
        %v1714 = vsub.f32 %v1225, %v1580
        %v1715 = vsub.f32 %v1227, %v1580
        %v1716 = vsub.f32 %v1418, %v1580
        %v1717 = vsub.f32 %v1420, %v1580
        %v1718 = vsub.f32 %v1229, %v1585
        %v1719 = vsub.f32 %v1231, %v1585
        %v1720 = vsub.f32 %v1422, %v1585
        %v1721 = vsub.f32 %v1424, %v1585
        %v1722 = vsub.f32 %v1235, %v1590
        %v1723 = vsub.f32 %v1237, %v1590
        %v1724 = vsub.f32 %v1428, %v1590
        %v1725 = vsub.f32 %v1430, %v1590
        %v1726 = vsub.f32 %v1239, %v1595
        %v1727 = vsub.f32 %v1241, %v1595
        %v1728 = vsub.f32 %v1432, %v1595
        %v1729 = vsub.f32 %v1434, %v1595
        %v1730 = vsub.f32 %v1245, %v1600
        %v1731 = vsub.f32 %v1247, %v1600
        %v1732 = vsub.f32 %v1438, %v1600
        %v1733 = vsub.f32 %v1440, %v1600
        %v1734 = vsub.f32 %v1249, %v1605
        %v1735 = vsub.f32 %v1251, %v1605
        %v1736 = vsub.f32 %v1442, %v1605
        %v1737 = vsub.f32 %v1444, %v1605
        %v1738 = vsub.f32 %v1255, %v1610
        %v1739 = vsub.f32 %v1257, %v1610
        %v1740 = vsub.f32 %v1448, %v1610
        %v1741 = vsub.f32 %v1450, %v1610
        %v1742 = vsub.f32 %v1259, %v1615
        %v1743 = vsub.f32 %v1261, %v1615
        %v1744 = vsub.f32 %v1452, %v1615
        %v1745 = vsub.f32 %v1454, %v1615
        %v1746 = vsub.f32 %v1265, %v1620
        %v1747 = vsub.f32 %v1267, %v1620
        %v1748 = vsub.f32 %v1458, %v1620
        %v1749 = vsub.f32 %v1460, %v1620
        %v1750 = vsub.f32 %v1269, %v1625
        %v1751 = vsub.f32 %v1271, %v1625
        %v1752 = vsub.f32 %v1462, %v1625
        %v1753 = vsub.f32 %v1464, %v1625
        %v1754 = vmul.f32 %v1626, 1.442695
        %v1755 = vpow.pop %v1754
        %v1756 = vmul.f32 %v1627, 1.442695
        %v1757 = vpow.pop %v1756
        %v1758 = vmul.f32 %v1628, 1.442695
        %v1759 = vpow.pop %v1758
        %v1760 = vmul.f32 %v1629, 1.442695
        %v1761 = vpow.pop %v1760
        %v1762 = vmul.f32 %v1630, 1.442695
        %v1763 = vpow.pop %v1762
        %v1764 = vmul.f32 %v1631, 1.442695
        %v1765 = vpow.pop %v1764
        %v1766 = vmul.f32 %v1632, 1.442695
        %v1767 = vpow.pop %v1766
        %v1768 = vmul.f32 %v1633, 1.442695
        %v1769 = vpow.pop %v1768
        %v1770 = vmul.f32 %v1634, 1.442695
        %v1771 = vpow.pop %v1770
        %v1772 = vmul.f32 %v1635, 1.442695
        %v1773 = vpow.pop %v1772
        %v1774 = vmul.f32 %v1636, 1.442695
        %v1775 = vpow.pop %v1774
        %v1776 = vmul.f32 %v1637, 1.442695
        %v1777 = vpow.pop %v1776
        %v1778 = vmul.f32 %v1638, 1.442695
        %v1779 = vpow.pop %v1778
        %v1780 = vmul.f32 %v1639, 1.442695
        %v1781 = vpow.pop %v1780
        %v1782 = vmul.f32 %v1640, 1.442695
        %v1783 = vpow.pop %v1782
        %v1784 = vmul.f32 %v1641, 1.442695
        %v1785 = vpow.pop %v1784
        %v1786 = vmul.f32 %v1642, 1.442695
        %v1787 = vpow.pop %v1786
        %v1788 = vmul.f32 %v1643, 1.442695
        %v1789 = vpow.pop %v1788
        %v1790 = vmul.f32 %v1644, 1.442695
        %v1791 = vpow.pop %v1790
        %v1792 = vmul.f32 %v1645, 1.442695
        %v1793 = vpow.pop %v1792
        %v1794 = vmul.f32 %v1646, 1.442695
        %v1795 = vpow.pop %v1794
        %v1796 = vmul.f32 %v1647, 1.442695
        %v1797 = vpow.pop %v1796
        %v1798 = vmul.f32 %v1648, 1.442695
        %v1799 = vpow.pop %v1798
        %v1800 = vmul.f32 %v1649, 1.442695
        %v1801 = vpow.pop %v1800
        %v1802 = vmul.f32 %v1650, 1.442695
        %v1803 = vpow.pop %v1802
        %v1804 = vmul.f32 %v1651, 1.442695
        %v1805 = vpow.pop %v1804
        %v1806 = vmul.f32 %v1652, 1.442695
        %v1807 = vpow.pop %v1806
        %v1808 = vmul.f32 %v1653, 1.442695
        %v1809 = vpow.pop %v1808
        %v1810 = vmul.f32 %v1654, 1.442695
        %v1811 = vpow.pop %v1810
        %v1812 = vmul.f32 %v1655, 1.442695
        %v1813 = vpow.pop %v1812
        %v1814 = vmul.f32 %v1656, 1.442695
        %v1815 = vpow.pop %v1814
        %v1816 = vmul.f32 %v1657, 1.442695
        %v1817 = vpow.pop %v1816
        %v1818 = vmul.f32 %v1658, 1.442695
        %v1819 = vpow.pop %v1818
        %v1820 = vmul.f32 %v1659, 1.442695
        %v1821 = vpow.pop %v1820
        %v1822 = vmul.f32 %v1660, 1.442695
        %v1823 = vpow.pop %v1822
        %v1824 = vmul.f32 %v1661, 1.442695
        %v1825 = vpow.pop %v1824
        %v1826 = vmul.f32 %v1662, 1.442695
        %v1827 = vpow.pop %v1826
        %v1828 = vmul.f32 %v1663, 1.442695
        %v1829 = vpow.pop %v1828
        %v1830 = vmul.f32 %v1664, 1.442695
        %v1831 = vpow.pop %v1830
        %v1832 = vmul.f32 %v1665, 1.442695
        %v1833 = vpow.pop %v1832
        %v1834 = vmul.f32 %v1666, 1.442695
        %v1835 = vpow.pop %v1834
        %v1836 = vmul.f32 %v1667, 1.442695
        %v1837 = vpow.pop %v1836
        %v1838 = vmul.f32 %v1668, 1.442695
        %v1839 = vpow.pop %v1838
        %v1840 = vmul.f32 %v1669, 1.442695
        %v1841 = vpow.pop %v1840
        %v1842 = vmul.f32 %v1670, 1.442695
        %v1843 = vpow.pop %v1842
        %v1844 = vmul.f32 %v1671, 1.442695
        %v1845 = vpow.pop %v1844
        %v1846 = vmul.f32 %v1672, 1.442695
        %v1847 = vpow.pop %v1846
        %v1848 = vmul.f32 %v1673, 1.442695
        %v1849 = vpow.pop %v1848
        %v1850 = vmul.f32 %v1674, 1.442695
        %v1851 = vpow.pop %v1850
        %v1852 = vmul.f32 %v1675, 1.442695
        %v1853 = vpow.pop %v1852
        %v1854 = vmul.f32 %v1676, 1.442695
        %v1855 = vpow.pop %v1854
        %v1856 = vmul.f32 %v1677, 1.442695
        %v1857 = vpow.pop %v1856
        %v1858 = vmul.f32 %v1678, 1.442695
        %v1859 = vpow.pop %v1858
        %v1860 = vmul.f32 %v1679, 1.442695
        %v1861 = vpow.pop %v1860
        %v1862 = vmul.f32 %v1680, 1.442695
        %v1863 = vpow.pop %v1862
        %v1864 = vmul.f32 %v1681, 1.442695
        %v1865 = vpow.pop %v1864
        %v1866 = vmul.f32 %v1682, 1.442695
        %v1867 = vpow.pop %v1866
        %v1868 = vmul.f32 %v1683, 1.442695
        %v1869 = vpow.pop %v1868
        %v1870 = vmul.f32 %v1684, 1.442695
        %v1871 = vpow.pop %v1870
        %v1872 = vmul.f32 %v1685, 1.442695
        %v1873 = vpow.pop %v1872
        %v1874 = vmul.f32 %v1686, 1.442695
        %v1875 = vpow.pop %v1874
        %v1876 = vmul.f32 %v1687, 1.442695
        %v1877 = vpow.pop %v1876
        %v1878 = vmul.f32 %v1688, 1.442695
        %v1879 = vpow.pop %v1878
        %v1880 = vmul.f32 %v1689, 1.442695
        %v1881 = vpow.pop %v1880
        %v1882 = vmul.f32 %v1690, 1.442695
        %v1883 = vpow.pop %v1882
        %v1884 = vmul.f32 %v1691, 1.442695
        %v1885 = vpow.pop %v1884
        %v1886 = vmul.f32 %v1692, 1.442695
        %v1887 = vpow.pop %v1886
        %v1888 = vmul.f32 %v1693, 1.442695
        %v1889 = vpow.pop %v1888
        %v1890 = vmul.f32 %v1694, 1.442695
        %v1891 = vpow.pop %v1890
        %v1892 = vmul.f32 %v1695, 1.442695
        %v1893 = vpow.pop %v1892
        %v1894 = vmul.f32 %v1696, 1.442695
        %v1895 = vpow.pop %v1894
        %v1896 = vmul.f32 %v1697, 1.442695
        %v1897 = vpow.pop %v1896
        %v1898 = vmul.f32 %v1698, 1.442695
        %v1899 = vpow.pop %v1898
        %v1900 = vmul.f32 %v1699, 1.442695
        %v1901 = vpow.pop %v1900
        %v1902 = vmul.f32 %v1700, 1.442695
        %v1903 = vpow.pop %v1902
        %v1904 = vmul.f32 %v1701, 1.442695
        %v1905 = vpow.pop %v1904
        %v1906 = vmul.f32 %v1702, 1.442695
        %v1907 = vpow.pop %v1906
        %v1908 = vmul.f32 %v1703, 1.442695
        %v1909 = vpow.pop %v1908
        %v1910 = vmul.f32 %v1704, 1.442695
        %v1911 = vpow.pop %v1910
        %v1912 = vmul.f32 %v1705, 1.442695
        %v1913 = vpow.pop %v1912
        %v1914 = vmul.f32 %v1706, 1.442695
        %v1915 = vpow.pop %v1914
        %v1916 = vmul.f32 %v1707, 1.442695
        %v1917 = vpow.pop %v1916
        %v1918 = vmul.f32 %v1708, 1.442695
        %v1919 = vpow.pop %v1918
        %v1920 = vmul.f32 %v1709, 1.442695
        %v1921 = vpow.pop %v1920
        %v1922 = vmul.f32 %v1710, 1.442695
        %v1923 = vpow.pop %v1922
        %v1924 = vmul.f32 %v1711, 1.442695
        %v1925 = vpow.pop %v1924
        %v1926 = vmul.f32 %v1712, 1.442695
        %v1927 = vpow.pop %v1926
        %v1928 = vmul.f32 %v1713, 1.442695
        %v1929 = vpow.pop %v1928
        %v1930 = vmul.f32 %v1714, 1.442695
        %v1931 = vpow.pop %v1930
        %v1932 = vmul.f32 %v1715, 1.442695
        %v1933 = vpow.pop %v1932
        %v1934 = vmul.f32 %v1716, 1.442695
        %v1935 = vpow.pop %v1934
        %v1936 = vmul.f32 %v1717, 1.442695
        %v1937 = vpow.pop %v1936
        %v1938 = vmul.f32 %v1718, 1.442695
        %v1939 = vpow.pop %v1938
        %v1940 = vmul.f32 %v1719, 1.442695
        %v1941 = vpow.pop %v1940
        %v1942 = vmul.f32 %v1720, 1.442695
        %v1943 = vpow.pop %v1942
        %v1944 = vmul.f32 %v1721, 1.442695
        %v1945 = vpow.pop %v1944
        %v1946 = vmul.f32 %v1722, 1.442695
        %v1947 = vpow.pop %v1946
        %v1948 = vmul.f32 %v1723, 1.442695
        %v1949 = vpow.pop %v1948
        %v1950 = vmul.f32 %v1724, 1.442695
        %v1951 = vpow.pop %v1950
        %v1952 = vmul.f32 %v1725, 1.442695
        %v1953 = vpow.pop %v1952
        %v1954 = vmul.f32 %v1726, 1.442695
        %v1955 = vpow.pop %v1954
        %v1956 = vmul.f32 %v1727, 1.442695
        %v1957 = vpow.pop %v1956
        %v1958 = vmul.f32 %v1728, 1.442695
        %v1959 = vpow.pop %v1958
        %v1960 = vmul.f32 %v1729, 1.442695
        %v1961 = vpow.pop %v1960
        %v1962 = vmul.f32 %v1730, 1.442695
        %v1963 = vpow.pop %v1962
        %v1964 = vmul.f32 %v1731, 1.442695
        %v1965 = vpow.pop %v1964
        %v1966 = vmul.f32 %v1732, 1.442695
        %v1967 = vpow.pop %v1966
        %v1968 = vmul.f32 %v1733, 1.442695
        %v1969 = vpow.pop %v1968
        %v1970 = vmul.f32 %v1734, 1.442695
        %v1971 = vpow.pop %v1970
        %v1972 = vmul.f32 %v1735, 1.442695
        %v1973 = vpow.pop %v1972
        %v1974 = vmul.f32 %v1736, 1.442695
        %v1975 = vpow.pop %v1974
        %v1976 = vmul.f32 %v1737, 1.442695
        %v1977 = vpow.pop %v1976
        %v1978 = vmul.f32 %v1738, 1.442695
        %v1979 = vpow.pop %v1978
        %v1980 = vmul.f32 %v1739, 1.442695
        %v1981 = vpow.pop %v1980
        %v1982 = vmul.f32 %v1740, 1.442695
        %v1983 = vpow.pop %v1982
        %v1984 = vmul.f32 %v1741, 1.442695
        %v1985 = vpow.pop %v1984
        %v1986 = vmul.f32 %v1742, 1.442695
        %v1987 = vpow.pop %v1986
        %v1988 = vmul.f32 %v1743, 1.442695
        %v1989 = vpow.pop %v1988
        %v1990 = vmul.f32 %v1744, 1.442695
        %v1991 = vpow.pop %v1990
        %v1992 = vmul.f32 %v1745, 1.442695
        %v1993 = vpow.pop %v1992
        %v1994 = vmul.f32 %v1746, 1.442695
        %v1995 = vpow.pop %v1994
        %v1996 = vmul.f32 %v1747, 1.442695
        %v1997 = vpow.pop %v1996
        %v1998 = vmul.f32 %v1748, 1.442695
        %v1999 = vpow.pop %v1998
        %v2000 = vmul.f32 %v1749, 1.442695
        %v2001 = vpow.pop %v2000
        %v2002 = vmul.f32 %v1750, 1.442695
        %v2003 = vpow.pop %v2002
        %v2004 = vmul.f32 %v1751, 1.442695
        %v2005 = vpow.pop %v2004
        %v2006 = vmul.f32 %v1752, 1.442695
        %v2007 = vpow.pop %v2006
        %v2008 = vmul.f32 %v1753, 1.442695
        %v2009 = vpow.pop %v2008
        %v2010 = vpack.c.bf16 %v1763, %v1755
        %v2011 = vpack.c.bf16 %v1765, %v1757
        %v2012 = vpack.c.bf16 %v1767, %v1759
        %v2013 = vpack.c.bf16 %v1769, %v1761
        %v2014 = vpack.c.bf16 %v1779, %v1771
        %v2015 = vpack.c.bf16 %v1781, %v1773
        %v2016 = vpack.c.bf16 %v1783, %v1775
        %v2017 = vpack.c.bf16 %v1785, %v1777
        %v2018 = vpack.c.bf16 %v1795, %v1787
        %v2019 = vpack.c.bf16 %v1797, %v1789
        %v2020 = vpack.c.bf16 %v1799, %v1791
        %v2021 = vpack.c.bf16 %v1801, %v1793
        %v2022 = vpack.c.bf16 %v1811, %v1803
        %v2023 = vpack.c.bf16 %v1813, %v1805
        %v2024 = vpack.c.bf16 %v1815, %v1807
        %v2025 = vpack.c.bf16 %v1817, %v1809
        %v2026 = vpack.c.bf16 %v1827, %v1819
        %v2027 = vpack.c.bf16 %v1829, %v1821
        %v2028 = vpack.c.bf16 %v1831, %v1823
        %v2029 = vpack.c.bf16 %v1833, %v1825
        %v2030 = vpack.c.bf16 %v1843, %v1835
        %v2031 = vpack.c.bf16 %v1845, %v1837
        %v2032 = vpack.c.bf16 %v1847, %v1839
        %v2033 = vpack.c.bf16 %v1849, %v1841
        %v2034 = vpack.c.bf16 %v1859, %v1851
        %v2035 = vpack.c.bf16 %v1861, %v1853
        %v2036 = vpack.c.bf16 %v1863, %v1855
        %v2037 = vpack.c.bf16 %v1865, %v1857
        %v2038 = vpack.c.bf16 %v1875, %v1867
        %v2039 = vpack.c.bf16 %v1877, %v1869
        %v2040 = vpack.c.bf16 %v1879, %v1871
        %v2041 = vpack.c.bf16 %v1881, %v1873
        %v2042 = vpack.c.bf16 %v1891, %v1883
        %v2043 = vpack.c.bf16 %v1893, %v1885
        %v2044 = vpack.c.bf16 %v1895, %v1887
        %v2045 = vpack.c.bf16 %v1897, %v1889
        %v2046 = vpack.c.bf16 %v1907, %v1899
        %v2047 = vpack.c.bf16 %v1909, %v1901
        %v2048 = vpack.c.bf16 %v1911, %v1903
        %v2049 = vpack.c.bf16 %v1913, %v1905
        %v2050 = vpack.c.bf16 %v1923, %v1915
        %v2051 = vpack.c.bf16 %v1925, %v1917
        %v2052 = vpack.c.bf16 %v1927, %v1919
        %v2053 = vpack.c.bf16 %v1929, %v1921
        %v2054 = vpack.c.bf16 %v1939, %v1931
        %v2055 = vpack.c.bf16 %v1941, %v1933
        %v2056 = vpack.c.bf16 %v1943, %v1935
        %v2057 = vpack.c.bf16 %v1945, %v1937
        %v2058 = vpack.c.bf16 %v1955, %v1947
        %v2059 = vpack.c.bf16 %v1957, %v1949
        %v2060 = vpack.c.bf16 %v1959, %v1951
        %v2061 = vpack.c.bf16 %v1961, %v1953
        %v2062 = vpack.c.bf16 %v1971, %v1963
        %v2063 = vpack.c.bf16 %v1973, %v1965
        %v2064 = vpack.c.bf16 %v1975, %v1967
        %v2065 = vpack.c.bf16 %v1977, %v1969
        %v2066 = vpack.c.bf16 %v1987, %v1979
        %v2067 = vpack.c.bf16 %v1989, %v1981
        %v2068 = vpack.c.bf16 %v1991, %v1983
        %v2069 = vpack.c.bf16 %v1993, %v1985
        %v2070 = vpack.c.bf16 %v2003, %v1995
        %v2071 = vpack.c.bf16 %v2005, %v1997
        %v2072 = vpack.c.bf16 %v2007, %v1999
        %v2073 = vpack.c.bf16 %v2009, %v2001
        %2074 = vmatprep.subr.bf16.mxu0 %v2011
        %2075 = vmatpush1.bf16.xpose.msra.mxu0 %v2010
        %2076 = vmatprep.subr.bf16.mxu0 %v2015
        %2077 = vmatpush1.bf16.xpose.msra.mxu0 %v2014
        %2078 = vmatprep.subr.bf16.mxu0 %v2019
        %2079 = vmatpush1.bf16.xpose.msra.mxu0 %v2018
        %2080 = vmatprep.subr.bf16.mxu0 %v2023
        %2081 = vmatpush1.bf16.xpose.msra.mxu0 %v2022
        %2082 = vmatprep.subr.bf16.mxu0 %v2027
        %2083 = vmatpush1.bf16.xpose.msra.mxu0 %v2026
        %2084 = vmatprep.subr.bf16.mxu0 %v2031
        %2085 = vmatpush1.bf16.xpose.msra.mxu0 %v2030
        %2086 = vmatprep.subr.bf16.mxu0 %v2035
        %2087 = vmatpush1.bf16.xpose.msra.mxu0 %v2034
        %2088 = vmatprep.subr.bf16.mxu0 %v2039
        %2089 = vmatpush1.bf16.xpose.msra.mxu0 %v2038
        %2090 = vmatprep.subr.bf16.mxu0 %v2043
        %2091 = vmatpush1.bf16.xpose.msra.mxu0 %v2042
        %2092 = vmatprep.subr.bf16.mxu0 %v2047
        %2093 = vmatpush1.bf16.xpose.msra.mxu0 %v2046
        %2094 = vmatprep.subr.bf16.mxu0 %v2051
        %2095 = vmatpush1.bf16.xpose.msra.mxu0 %v2050
        %2096 = vmatprep.subr.bf16.mxu0 %v2055
        %2097 = vmatpush1.bf16.xpose.msra.mxu0 %v2054
        %2098 = vmatprep.subr.bf16.mxu0 %v2059
        %2099 = vmatpush1.bf16.xpose.msra.mxu0 %v2058
        %2100 = vmatprep.subr.bf16.mxu0 %v2063
        %2101 = vmatpush1.bf16.xpose.msra.mxu0 %v2062
        %2102 = vmatprep.subr.bf16.mxu0 %v2067
        %2103 = vmatpush1.bf16.xpose.msra.mxu0 %v2066
        %2104 = vmatprep.subr.bf16.mxu0 %v2071
        %2105 = vmatpush1.bf16.xpose.msra.mxu0 %v2070
        %2106 = vmatprep.mubr.bf16.mxu0 %v691
        %2107 = vmatmul.mubr.bf16.gmra.mrb[0].mxu0 %v690
        %v2108 = vpop.f32.mrb[0].mxu0
        %v2109 = vadd.f32 0.0, %v2108
        %v2110 = vpop.f32.mrb[0].mxu0
        %v2111 = vadd.f32 0.0, %v2110
        %v2112 = vpop.f32.mrb[0].mxu0
        %v2113 = vadd.f32 0.0, %v2112
        %v2114 = vpop.f32.mrb[0].mxu0
        %v2115 = vadd.f32 0.0, %v2114
        %2116 = vdwg.mxu0
        %2117 = vmatprep.subr.bf16.mxu0 %v2013
        %2118 = vmatpush1.bf16.xpose.msra.mxu0 %v2012
        %2119 = vmatprep.subr.bf16.mxu0 %v2017
        %2120 = vmatpush1.bf16.xpose.msra.mxu0 %v2016
        %2121 = vmatprep.subr.bf16.mxu0 %v2021
        %2122 = vmatpush1.bf16.xpose.msra.mxu0 %v2020
        %2123 = vmatprep.subr.bf16.mxu0 %v2025
        %2124 = vmatpush1.bf16.xpose.msra.mxu0 %v2024
        %2125 = vmatprep.subr.bf16.mxu0 %v2029
        %2126 = vmatpush1.bf16.xpose.msra.mxu0 %v2028
        %2127 = vmatprep.subr.bf16.mxu0 %v2033
        %2128 = vmatpush1.bf16.xpose.msra.mxu0 %v2032
        %2129 = vmatprep.subr.bf16.mxu0 %v2037
        %2130 = vmatpush1.bf16.xpose.msra.mxu0 %v2036
        %2131 = vmatprep.subr.bf16.mxu0 %v2041
        %2132 = vmatpush1.bf16.xpose.msra.mxu0 %v2040
        %2133 = vmatprep.subr.bf16.mxu0 %v2045
        %2134 = vmatpush1.bf16.xpose.msra.mxu0 %v2044
        %2135 = vmatprep.subr.bf16.mxu0 %v2049
        %2136 = vmatpush1.bf16.xpose.msra.mxu0 %v2048
        %2137 = vmatprep.subr.bf16.mxu0 %v2053
        %2138 = vmatpush1.bf16.xpose.msra.mxu0 %v2052
        %2139 = vmatprep.subr.bf16.mxu0 %v2057
        %2140 = vmatpush1.bf16.xpose.msra.mxu0 %v2056
        %2141 = vmatprep.subr.bf16.mxu0 %v2061
        %2142 = vmatpush1.bf16.xpose.msra.mxu0 %v2060
        %2143 = vmatprep.subr.bf16.mxu0 %v2065
        %2144 = vmatpush1.bf16.xpose.msra.mxu0 %v2064
        %2145 = vmatprep.subr.bf16.mxu0 %v2069
        %2146 = vmatpush1.bf16.xpose.msra.mxu0 %v2068
        %2147 = vmatprep.subr.bf16.mxu0 %v2073
        %2148 = vmatpush1.bf16.xpose.msra.mxu0 %v2072
        %2149 = vmatprep.mubr.bf16.mxu0 %v693
        %2150 = vmatmul.mubr.bf16.gmra.mrb[0].mxu0 %v692
        %v2151 = vpop.f32.mrb[0].mxu0
        %v2152 = vadd.f32 %v2109, %v2151
        %v2153 = vpop.f32.mrb[0].mxu0
        %v2154 = vadd.f32 %v2111, %v2153
        %v2155 = vpop.f32.mrb[0].mxu0
        %v2156 = vadd.f32 %v2113, %v2155
        %v2157 = vpop.f32.mrb[0].mxu0
        %v2158 = vadd.f32 %v2115, %v2157
        %2159 = vdwg.mxu0
        %v2160 = vrcp.pop %v2156
        %v2161 = vrcp.pop %v2158
        %v2162 = vlaneseq
        %v2163 = vshrl.u32 %v2162, 7
        %v2164 = vsub.s32 0, %v2163
        %v2165 = vrot.slane %v2160, %v2164
        %v2166 = vlaneseq
        %v2167 = vshrl.u32 %v2166, 7
        %v2168 = vsub.s32 0, %v2167
        %v2169 = vrot.slane %v2161, %v2168
        %v2170 = vmul.f32 %v2152, %v2165
        %v2171 = vmul.f32 %v2154, %v2169
        %v2172 = vpack.c.bf16 %v2170, %v2170
        %v2173 = vpack.c.bf16 %v2171, %v2171
        %v2174 = vld [vmem:[%s7] sm:$0xf]
        %2176 = vset.pattern.permute.xlu0 2
        %2177 = vperm.xlu0 %2176, %v506
        %v2178 = vpop.permute.xlu0 %2177
        %v2181 = vsel %vm358, %v2174, 0
        %v2184 = vsel %vm571, %v2172, 0
        %v2187 = vsel %vm571, %v2173, 0
        %2189 = vmatprep.subr.bf16.mxu0 %v2187
        %2190 = vmatpush1.bf16.msra.mxu0 %v2184
        %2191 = vmatprep.subr.bf16.mxu0 0
        %2192 = vmatpush1.bf16.msra.mxu0 0
        %2193 = vmatprep.subr.bf16.mxu0 0
        %2194 = vmatpush1.bf16.msra.mxu0 0
        %2195 = vmatprep.subr.bf16.mxu0 0
        %2196 = vmatpush1.bf16.msra.mxu0 0
        %2197 = vmatprep.subr.bf16.mxu0 0
        %2198 = vmatpush1.bf16.msra.mxu0 0
        %2199 = vmatprep.subr.bf16.mxu0 0
        %2200 = vmatpush1.bf16.msra.mxu0 0
        %2201 = vmatprep.subr.bf16.mxu0 0
        %2202 = vmatpush1.bf16.msra.mxu0 0
        %2203 = vmatprep.subr.bf16.mxu0 0
        %2204 = vmatpush1.bf16.msra.mxu0 0
        %2205 = vmatprep.subr.bf16.mxu0 0
        %2206 = vmatpush1.bf16.msra.mxu0 0
        %2207 = vmatprep.subr.bf16.mxu0 0
        %2208 = vmatpush1.bf16.msra.mxu0 0
        %2209 = vmatprep.subr.bf16.mxu0 0
        %2210 = vmatpush1.bf16.msra.mxu0 0
        %2211 = vmatprep.subr.bf16.mxu0 0
        %2212 = vmatpush1.bf16.msra.mxu0 0
        %2213 = vmatprep.subr.bf16.mxu0 0
        %2214 = vmatpush1.bf16.msra.mxu0 0
        %2215 = vmatprep.subr.bf16.mxu0 0
        %2216 = vmatpush1.bf16.msra.mxu0 0
        %2217 = vmatprep.subr.bf16.mxu0 0
        %2218 = vmatpush1.bf16.msra.mxu0 0
        %2219 = vmatprep.subr.bf16.mxu0 0
        %2220 = vmatpush1.bf16.msra.mxu0 0
        %2221 = vmatprep.mubr.bf16.mxu0 0
        %2222 = vmatmul.mubr.bf16.gmra.mrb[0].mxu0 %v2181
        %v2223 = vpop.f32.mrb[0].mxu0
        %v2224 = vadd.f32 %v2178, %v2223
        %v2225 = vpop.f32.mrb[0].mxu0
        %v2226 = vadd.f32 %v2178, %v2225
        %v2227 = vpop.f32.mrb[0].mxu0
        %v2228 = vpop.f32.mrb[0].mxu0
        %2229 = vdwg.mxu0
        %v2230 = vadd.f32 %v2224, %v698
        %v2231 = vadd.f32 %v2226, %v699
        %2232 = vst [vmem:[%s335] sm:$0xff] %v2230
        %2233 = vst [vmem:[%s335 + $0x8] sm:$0xff] %v2231
        %s2234 = sand.u32 %s220, 1
        %s2235 = scalar_lea.sflag [#allocation4], %s2234
        %s2236 = sand.u32 %s220, 1
        %s2237 = smul.addr %s2236, 16
        %s2238 = scalar_lea.vmem [#allocation5], %s2237
        // Predicated region
        $region57: #{tpu_custom_call.1} parent=51 // pred_check
          %p2239 = pneg %p230
        $region58: #{tpu_custom_call.1} parent=51 // pred_check_branch
          %2241 = sbr.rel (%p2239) target = $region60
        $region59: #{tpu_custom_call.1} parent=51 // pred_region
          %s2242 = smul.u32 2, %s30
          %s2244 = ssub.s32 256, 256
          %2245 = vsyncadd %s2235, %s2244
          %s2246 = smul.addr %s29, 4
          %s2247 = sadd.s32 %s2242, %s2246
          %s2248 = smul.addr %s2247, 128
          %s2249 = scalar_lea.hbm %s8, %s2248
          %s2251 = sshll.u32 %s2238, 4
          %s2252 = int_to_ptr.vmem [resolvable:$true] %s2251
          %2254 = dma.vmem_to_hbm [thread:$0]  %s2252, 256, %s2249, %s2235
        $region60: #{tpu_custom_call.1} parent=51 // pred_fallthru
          _
      $region52: #{tpu_custom_call.1} parent=5 // pred_fallthru
        _
      %p2255 = scmp.le.s32.totalorder 2, %s20
      // Predicated region
      $region61: #{tpu_custom_call.1} parent=5 // pred_check
        %p2256 = pneg %p2255
      $region62: #{tpu_custom_call.1} parent=5 // pred_check_branch
        %2258 = sbr.rel (%p2256) target = $region64
      $region63: #{tpu_custom_call.1} parent=5 // pred_region
        %s2259 = ssub.s32 %s20, 2
        // Predicated region
        $region65: #{tpu_custom_call.1} parent=63 // pred_check
          %p2260 = pneg %p236
        $region66: #{tpu_custom_call.1} parent=63 // pred_check_branch
          %2262 = sbr.rel (%p2260) target = $region68
        $region67: #{tpu_custom_call.1} parent=63 // pred_region
          %s2263 = sand.u32 %s221, 1
          %s2264 = scalar_lea.sflag [#allocation4], %s2263
          %s2265 = sand.u32 %s221, 1
          %s2266 = smul.addr %s2265, 16
          %s2267 = scalar_lea.vmem [#allocation5], %s2266
          %2268 = dma.done %s2264, 256
        $region68: #{tpu_custom_call.1} parent=63 // pred_fallthru
          _
      $region64: #{tpu_custom_call.1} parent=5 // pred_fallthru
        _
    $region6: #{tpu_custom_call.1} parent=1 // loop_footer
      %s24 = sadd.s32 1, %s20
    $region7: #{tpu_custom_call.1} parent=1 // loop_footer_branch
      %19 = sbr.rel target = $region3
    $region8: #{tpu_custom_call.1} parent=1 // loop_exit
      _
    %2269 = vsyncpa [#allocation3], 1
    %s2270 = scalar_lea.sflag [#allocation3], 1
    %2271 = vsyncpa %s2270, 1
    %2272 = vsyncpa [#allocation4], 1
    %s2273 = scalar_lea.sflag [#allocation4], 1
    %2274 = vsyncpa %s2273, 1

</llo_original>
